<compile_context>
chip_gen: v7x
topology: tpu7x:2x2x1
jax: 0.10.0
libtpu: 0.0.40
codegen_flags: <defaults>
</compile_context>

<pallas_src>
import jax
import jax.numpy as jnp
from jax import lax
from jax.experimental import pallas as pl
from jax.experimental.pallas import tpu as pltpu

_LANE = 128


def _sog_kernel(x_ref, w12_ref, b12_ref, w3s_ref, b3_ref, o_ref):
    """One (C_in, tile_l) slab of one batch element. Lane axis = L."""
    f32 = jnp.float32
    # Full-precision MXU passes only on the f32 (exact-check) path; bf16
    # operands are exact in a single pass so default precision is fine there.
    prec = lax.Precision.HIGHEST if w12_ref.dtype == f32 else None

    # Elementwise math stays f32 (v5e VPU/EUP have no bf16 path); only the
    # matmul operands are cast to the (possibly bf16) weight dtype.
    x = x_ref[...].astype(f32)
    x2 = x * x

    # Folded conv1+conv2 + output negation:
    #   -relu(W2(W1 x^2 + b1) + b2) == min(W12 x^2 + b12, 0)
    h = jnp.dot(w12_ref[...], x2.astype(w12_ref.dtype),
                preferred_element_type=f32, precision=prec) + b12_ref[...]
    h = jnp.minimum(h, 0.0)

    # exp runs on the EUP (own bundle slot).
    e = jnp.exp(h)

    # conv3 with `scale` folded into the weight: out = (W3 * scale^T) @ e + b3
    out = jnp.dot(w3s_ref[...], e.astype(w3s_ref.dtype),
                  preferred_element_type=f32, precision=prec) + b3_ref[...]
    o_ref[...] = out.astype(o_ref.dtype)


def _vmem_limit_bytes():
    """Generation-aware scoped-VMEM limit (v5e/v6e: 128 MiB, v7x: 64 MiB/TC)."""
    cap = None
    try:
        cap = getattr(pltpu.get_tpu_info(), "vmem_capacity_bytes", None)
    except Exception:
        cap = None
    if not cap:
        cap = 64 * 1024 * 1024  # conservative fallback (v7x per-TC VMEM)
    return min(int(cap) * 3 // 4, 96 * 1024 * 1024)


def _choose_tile_l(B, L_pad, c_in, hidden, io_bytes, vmem_limit,
                   min_total_blocks=4):
    """Largest lane-dense L tile that (a) fits the VMEM budget (double-buffered
    in/out slabs + f32 intermediates) and (b) leaves >= min_total_blocks grid
    steps so both v7x TensorCores get work via the 'parallel' axes."""
    # bytes of VMEM per lane of tile_l:
    #   2x double-buffered in + out slabs, plus f32 intermediates (x^2, h, e,
    #   out) and bf16 dot-operand copies (folded into the 8*(c+h) slack term).
    per_lane = 2 * 2 * c_in * io_bytes + 8 * (c_in + hidden)
    budget = int(vmem_limit * 0.7)
    max_by_vmem = max(_LANE, (budget // per_lane) // _LANE * _LANE)

    n_l_target = max(1, -(-min_total_blocks // B))      # ceil(min_blocks / B)
    max_by_par = max(_LANE, (L_pad // n_l_target) // _LANE * _LANE)

    tile = min(L_pad, max_by_vmem, max_by_par)
    while L_pad % tile:                                  # keep a 128-mult divisor
        tile -= _LANE
    return tile


def sog_net1d_forward(x, params, *, tile_l=None,
                      io_dtype=jnp.bfloat16, mxu_dtype=jnp.bfloat16):
    """x: (B, C_in, L) in native PyTorch NCL layout. Returns (B, C_in, L) in
    io_dtype (bf16 by default; pass io_dtype=mxu_dtype=float32 for exact mode)."""
    w1, b1, w2, b2, scale, w3, b3 = (params[k] for k in
                                     ("w1", "b1", "w2", "b2", "scale", "w3", "b3"))
    B, C_in, L = x.shape
    H = w1.shape[0]
    hp = lax.Precision.HIGHEST

    # ---- exact algebraic folds (done once, in f32, in the wrapper) ----------
    #   conv1 o conv2 (adjacent linear 1x1 convs) + output negation:
    w12 = (-jnp.dot(w2, w1, precision=hp)).astype(mxu_dtype)            # (H, C_in)
    b12 = (-(jnp.dot(w2, b1, precision=hp) + b2)).astype(jnp.float32)   # (H, 1)
    #   conv3 absorbs `scale`:  W3 @ (scale * e) == (W3 * scale^T) @ e
    w3s = (w3 * scale.reshape(1, H)).astype(mxu_dtype)                  # (C_in, H)
    b3f = b3.astype(jnp.float32)                                        # (C_in, 1)

    # ---- bf16 HBM I/O + lane padding to a multiple of 128 -------------------
    x = x.astype(io_dtype)
    io_bytes = jnp.dtype(io_dtype).itemsize
    L_pad = -(-L // _LANE) * _LANE
    if L_pad != L:
        x = jnp.pad(x, ((0, 0), (0, 0), (0, L_pad - L)))

    vmem_limit = _vmem_limit_bytes()
    if tile_l is None:
        tile_l = _choose_tile_l(B, L_pad, C_in, H, io_bytes, vmem_limit)
    assert L_pad % tile_l == 0 and tile_l % _LANE == 0
    grid = (B, L_pad // tile_l)

    full = lambda a: pl.BlockSpec(a.shape, lambda b, l: (0, 0))

    N = B * L_pad
    cost = pl.CostEstimate(
        flops=2 * N * (C_in * H + H * C_in),
        transcendentals=N * H,
        bytes_accessed=2 * N * C_in * io_bytes
        + (w12.size + w3s.size) * jnp.dtype(mxu_dtype).itemsize
        + (b12.size + b3f.size) * 4,
    )

    out = pl.pallas_call(
        _sog_kernel,
        out_shape=jax.ShapeDtypeStruct((B, C_in, L_pad), io_dtype),
        grid_spec=pltpu.PrefetchScalarGridSpec(
            num_scalar_prefetch=0,
            grid=grid,
            in_specs=[
                # Streaming x slab. On v7x, add pipeline_mode=pl.Buffered(3)
                # here if an xprof trace still shows exposed DMA.
                pl.BlockSpec((None, C_in, tile_l), lambda b, l: (b, 0, l)),
                full(w12),   # (H, C_in)
                full(b12),   # (H, 1)
                full(w3s),   # (C_in, H)
                full(b3f),   # (C_in, 1)
            ],
            out_specs=pl.BlockSpec((None, C_in, tile_l), lambda b, l: (b, 0, l)),
        ),
        compiler_params=pltpu.CompilerParams(
            dimension_semantics=("parallel", "parallel"),
            vmem_limit_bytes=vmem_limit,
        ),
        cost_estimate=cost,
    )(x, w12, b12, w3s, b3f)

    return out[..., :L] if L_pad != L else out


def init_params(key, in_channels, hidden_channels):
    """Deterministic init mimicking PyTorch Conv1d default (uniform +-1/sqrt(fan_in)).
    Weights stored in PyTorch (out, in) layout; biases as (out, 1) columns."""
    ks = jax.random.split(key, 6)

    def conv_init(kw, kb, fan_in, fan_out):
        bound = 1.0 / (fan_in ** 0.5)
        w = jax.random.uniform(kw, (fan_out, fan_in), jnp.float32, -bound, bound)
        b = jax.random.uniform(kb, (fan_out, 1), jnp.float32, -bound, bound)
        return w, b

    w1, b1 = conv_init(ks[0], ks[1], in_channels, hidden_channels)
    w2, b2 = conv_init(ks[2], ks[3], hidden_channels, hidden_channels)
    w3, b3 = conv_init(ks[4], ks[5], hidden_channels, in_channels)
    # nn.Parameter(torch.ones(hidden_channels, 1)) -> (H, 1), broadcast over L.
    scale = jnp.ones((hidden_channels, 1), jnp.float32)
    return dict(w1=w1, b1=b1, w2=w2, b2=b2, scale=scale, w3=w3, b3=b3)


def reference_forward(x, params):
    """Pure-JAX reference in native NCL layout, no folds (checks folds are exact)."""
    hp = lax.Precision.HIGHEST
    x2 = x * x
    h = jnp.einsum("hc,bcl->bhl", params["w1"], x2, precision=hp) + params["b1"][None]
    h = -jax.nn.relu(jnp.einsum("gh,bhl->bgl", params["w2"], h, precision=hp)
                     + params["b2"][None])
    h = jnp.exp(h) * params["scale"][None]
    out = jnp.einsum("ch,bhl->bcl", params["w3"], h, precision=hp) + params["b3"][None]
    return out


def _rel_l2(a, b):
    a = a.astype(jnp.float32)
    b = b.astype(jnp.float32)
    return float(jnp.linalg.norm(a - b) / (jnp.linalg.norm(b) + 1e-12))


if __name__ == "__main__":
    B, C_in, H, L = 2, 4, 32, 512

    key = jax.random.PRNGKey(0)
    k_x, k_p = jax.random.split(key)
    x = jax.random.normal(k_x, (B, C_in, L), jnp.float32)
    params = init_params(k_p, C_in, H)

    ref = reference_forward(x, params)

    # 1) f32 I/O + f32 MXU path: validates the conv1+conv2 / -relu / scale folds.
    out_f32 = jax.block_until_ready(
        sog_net1d_forward(x, params, io_dtype=jnp.float32, mxu_dtype=jnp.float32))
    assert out_f32.shape == (B, C_in, L)
    assert jnp.allclose(out_f32, ref, atol=1e-4, rtol=1e-4), "f32 path mismatch"

    # 2) Optimized default path: bf16 HBM I/O + bf16 MXU operands, f32 accumulation.
    out_bf = jax.block_until_ready(sog_net1d_forward(x, params))
    ref_q = reference_forward(x.astype(jnp.bfloat16).astype(jnp.float32), params)
    assert out_bf.shape == (B, C_in, L)
    assert _rel_l2(out_bf, ref_q) < 2e-2, "bf16 path mismatch"

    # 3) Ragged L (not a multiple of 128): wrapper pads to 256 lanes, slices back.
    Lr = 200
    xr = x[..., :Lr]
    out_r = jax.block_until_ready(sog_net1d_forward(xr, params))
    ref_r = reference_forward(xr.astype(jnp.bfloat16).astype(jnp.float32), params)
    assert out_r.shape == (B, C_in, Lr)
    assert _rel_l2(out_r, ref_r) < 2e-2, "ragged-L path mismatch"

    print("KERNEL_OK")
</pallas_src>

<mosaic_0001>
module attributes {stable_mosaic.version = 11 : i64} {
  func.func @_sog_kernel(%arg0: i32, %arg1: i32, %arg2: memref<1x4x256xf32, #tpu.memory_space<vmem>>, %arg3: memref<32x4xf32, #tpu.memory_space<vmem>>, %arg4: memref<32x1xf32, #tpu.memory_space<vmem>>, %arg5: memref<4x32xf32, #tpu.memory_space<vmem>>, %arg6: memref<4x1xf32, #tpu.memory_space<vmem>>, %arg7: memref<1x4x256xf32, #tpu.memory_space<vmem>>) attributes {dimension_semantics = [#tpu.dimension_semantics<parallel>, #tpu.dimension_semantics<parallel>], iteration_bounds = array<i64: 2, 2>, scalar_prefetch = 0 : i64, scratch_operands = 0 : i64, tpu.core_type = #tpu.core_type<tc>, window_params = [{transform_indices = @transform_0, window_bounds = array<i64: 1, 4, 256>}, {pipeline_mode = #tpu.pipeline_mode<synchronous>, transform_indices = @transform_1, window_bounds = array<i64: 32, 4>}, {pipeline_mode = #tpu.pipeline_mode<synchronous>, transform_indices = @transform_2, window_bounds = array<i64: 32, 1>}, {pipeline_mode = #tpu.pipeline_mode<synchronous>, transform_indices = @transform_3, window_bounds = array<i64: 4, 32>}, {pipeline_mode = #tpu.pipeline_mode<synchronous>, transform_indices = @transform_4, window_bounds = array<i64: 4, 1>}, {transform_indices = @transform_5, window_bounds = array<i64: 1, 4, 256>}]} {
    %c0 = arith.constant 0 : index
    %c0_0 = arith.constant 0 : index
    %c0_1 = arith.constant 0 : index
    %0 = vector.load %arg2[%c0, %c0_0, %c0_1] : memref<1x4x256xf32, #tpu.memory_space<vmem>>, vector<1x4x256xf32>
    %1 = vector.shape_cast %0 : vector<1x4x256xf32> to vector<4x256xf32>
    %2 = arith.mulf %1, %1 : vector<4x256xf32>
    %c0_2 = arith.constant 0 : index
    %c0_3 = arith.constant 0 : index
    %3 = vector.load %arg3[%c0_2, %c0_3] : memref<32x4xf32, #tpu.memory_space<vmem>>, vector<32x4xf32>
    %cst = arith.constant dense<0.000000e+00> : vector<32x256xf32>
    %4 = tpu.matmul %3, %2, %cst {dimension_numbers = #tpu.dot_dimension_numbers<[1], [0], [0], [1], [0, 0, 1, 1], [], []>, precision = #tpu.contract_precision<fp32>} : vector<32x4xf32>, vector<4x256xf32>, vector<32x256xf32> -> vector<32x256xf32>
    %c0_4 = arith.constant 0 : index
    %c0_5 = arith.constant 0 : index
    %5 = vector.load %arg4[%c0_4, %c0_5] : memref<32x1xf32, #tpu.memory_space<vmem>>, vector<32x1xf32>
    %6 = vector.broadcast %5 : vector<32x1xf32> to vector<32x256xf32>
    %7 = arith.addf %4, %6 : vector<32x256xf32>
    %cst_6 = arith.constant 0.000000e+00 : f32
    %8 = vector.broadcast %cst_6 : f32 to vector<32x256xf32>
    %9 = arith.minimumf %7, %8 : vector<32x256xf32>
    %10 = math.exp %9 : vector<32x256xf32>
    %c0_7 = arith.constant 0 : index
    %c0_8 = arith.constant 0 : index
    %11 = vector.load %arg5[%c0_7, %c0_8] : memref<4x32xf32, #tpu.memory_space<vmem>>, vector<4x32xf32>
    %cst_9 = arith.constant dense<0.000000e+00> : vector<4x256xf32>
    %12 = tpu.matmul %11, %10, %cst_9 {dimension_numbers = #tpu.dot_dimension_numbers<[1], [0], [0], [1], [0, 0, 1, 1], [], []>, precision = #tpu.contract_precision<fp32>} : vector<4x32xf32>, vector<32x256xf32>, vector<4x256xf32> -> vector<4x256xf32>
    %c0_10 = arith.constant 0 : index
    %c0_11 = arith.constant 0 : index
    %13 = vector.load %arg6[%c0_10, %c0_11] : memref<4x1xf32, #tpu.memory_space<vmem>>, vector<4x1xf32>
    %14 = vector.broadcast %13 : vector<4x1xf32> to vector<4x256xf32>
    %15 = arith.addf %12, %14 : vector<4x256xf32>
    %c0_12 = arith.constant 0 : index
    %c0_13 = arith.constant 0 : index
    %c0_14 = arith.constant 0 : index
    %16 = vector.load %arg7[%c0_12, %c0_13, %c0_14] : memref<1x4x256xf32, #tpu.memory_space<vmem>>, vector<1x4x256xf32>
    %17 = vector.shape_cast %16 : vector<1x4x256xf32> to vector<4x256xf32>
    %18 = vector.shape_cast %15 : vector<4x256xf32> to vector<1x4x256xf32>
    tpu.vector_store %arg7[%c0_12, %c0_13, %c0_14], %18 {strides = array<i32>} : memref<1x4x256xf32, #tpu.memory_space<vmem>>, vector<1x4x256xf32>,
    return
  }
  func.func @transform_0(%arg0: i32, %arg1: i32) -> (i32, i32, i32) {
    %c0_i32 = arith.constant 0 : i32
    %c0_i32_0 = arith.constant 0 : i32
    return %arg0, %c0_i32, %arg1 : i32, i32, i32
  }
  func.func @transform_1(%arg0: i32, %arg1: i32) -> (i32, i32) {
    %c0_i32 = arith.constant 0 : i32
    %c0_i32_0 = arith.constant 0 : i32
    %c0_i32_1 = arith.constant 0 : i32
    return %c0_i32, %c0_i32_0 : i32, i32
  }
  func.func @transform_2(%arg0: i32, %arg1: i32) -> (i32, i32) {
    %c0_i32 = arith.constant 0 : i32
    %c0_i32_0 = arith.constant 0 : i32
    %c0_i32_1 = arith.constant 0 : i32
    return %c0_i32, %c0_i32_0 : i32, i32
  }
  func.func @transform_3(%arg0: i32, %arg1: i32) -> (i32, i32) {
    %c0_i32 = arith.constant 0 : i32
    %c0_i32_0 = arith.constant 0 : i32
    %c0_i32_1 = arith.constant 0 : i32
    return %c0_i32, %c0_i32_0 : i32, i32
  }
  func.func @transform_4(%arg0: i32, %arg1: i32) -> (i32, i32) {
    %c0_i32 = arith.constant 0 : i32
    %c0_i32_0 = arith.constant 0 : i32
    %c0_i32_1 = arith.constant 0 : i32
    return %c0_i32, %c0_i32_0 : i32, i32
  }
  func.func @transform_5(%arg0: i32, %arg1: i32) -> (i32, i32, i32) {
    %c0_i32 = arith.constant 0 : i32
    %c0_i32_0 = arith.constant 0 : i32
    return %arg0, %c0_i32, %arg1 : i32, i32, i32
  }
}

</mosaic_0001>

<llo_original>
// kernel: tpu_custom_call.1
$region0: #{tpu_custom_call.1}
  #allocation0 [shape = 'u32[]', space=smem, size = 0x4, offset = 0x4, fixed_abs, tag = 'smem constant byte address 0x4 - core index']
  #allocation1 [shape = 'u32[144,128]{1,0:T(1,128)}', space=vmem, size = 0x12000, scoped, tag = 'internal scratch']
  %s0 = inlined_call_operand.vmem [shape: f32[2,4,512], index: 0, kind: input, shape index: {}]
  %s1 = inlined_call_operand.vmem [shape: f32[32,4], index: 1, kind: input, shape index: {}]
  %s2 = inlined_call_operand.vmem [shape: f32[32,1], index: 2, kind: input, shape index: {}]
  %s3 = inlined_call_operand.vmem [shape: f32[4,32], index: 3, kind: input, shape index: {}]
  %s4 = inlined_call_operand.vmem [shape: f32[4,1], index: 4, kind: input, shape index: {}]
  %s5 = inlined_call_operand.hbm [shape: f32[2,4,512], index: 5, kind: output, shape index: {}]
  %s6 = sld [smem:[#allocation0]]
  $region53: #{tpu_custom_call.1} parent=0
    _
  %s8 = ssub.s32 1, %s6
  %s9 = scalar_select 0, %s8, %s6
  $region1: #{tpu_custom_call.1} parent=0
    #allocation2 [shape = 'u8[8192]{0}', space=vmem, size = 0x2000, scoped, tag = 'output window, operand 0']
    #allocation3 [shape = 's32[2]{0}', space=sflag, size = 0x8, scoped, tag = 'scoped memory for tpu_custom_call.1']
    %10 = vsyncpa [#allocation3], 0
    %s11 = scalar_lea.sflag [#allocation3], 1
    %12 = vsyncpa %s11, 0
    loop: start=0, step=1, limit=6
    $region2: #{tpu_custom_call.1} parent=1 // loop_pre_header
      _
    $region3: #{tpu_custom_call.1} parent=1 // loop_header
      %s14 = sphi 0, %s18
      %p15 = scmp.ge.s32.totalorder %s14, 6
      %s21 = sphi 0, %s33
      %s22 = sphi 0, %s29
      %s23 = sphi 0, %s21
      %s24 = sphi 0, %s22
      %s25 = sphi 0, %s23
      %s26 = sphi 0, %s24
      %s38 = sphi 0, %s40
      %s41 = sphi 0, %s38
      %s42 = sphi 0, %s41
      %s58 = sphi 0, %s42
      %s62 = sphi 0, %s62
      %s64 = sphi 0, %s62
      %s65 = sphi 0, %s64
      %s79 = sphi 0, %s65
      %s83 = sphi 0, %s83
      %s85 = sphi 0, %s83
      %s86 = sphi 0, %s85
      %s100 = sphi 0, %s86
      %s104 = sphi 0, %s104
      %s106 = sphi 0, %s104
      %s107 = sphi 0, %s106
      %s121 = sphi 0, %s107
      %s125 = sphi 0, %s125
      %s127 = sphi 0, %s125
      %s128 = sphi 0, %s127
      %s142 = sphi 0, %s128
      %s150 = sphi 0, %s152
      %s153 = sphi 0, %s150
      %s154 = sphi 0, %s153
      %s170 = sphi 0, %s154
    $region4: #{tpu_custom_call.1} parent=1 // loop_header_branch
      %17 = sbr.rel (%p15) target = $region8
    $region5: #{tpu_custom_call.1} parent=1 // loop_body
      %s19 = ssub.s32 %s14, 1
      %s20 = ssub.s32 %s14, 2
      %s27 = sadd.s32 1, %s22
      %p28 = scmp.ge.s32.totalorder %s27, 2
      %s29 = scalar_select %p28, 0, %s27
      %s30 = sadd.s32 1, %s21
      %s31 = scalar_select %p28, %s30, %s21
      %p32 = scmp.ge.s32.totalorder %s31, 2
      %s33 = scalar_select %p32, 0, %s31
      %s34 = ssub.s32 %s21, %s33
      %s35 = ssub.s32 %s22, %s29
      %s36 = sor.u32 %s34, %s35
      %p37 = scmp.eq.s32.totalorder %s36, 0
      %s39 = sadd.s32 %s38, 1
      %s40 = scalar_select %p37, %s38, %s39
      %p43 = pneg %p37
      %p44 = scmp.eq.s32.totalorder %s14, 3
      %p45 = por %p43, %p44
      %p46 = scmp.ne.s32.totalorder %s38, %s41
      %p47 = scmp.eq.s32.totalorder %s14, 0
      %p48 = por %p46, %p47
      %p49 = scmp.ne.s32.totalorder %s38, %s41
      %p50 = scmp.eq.s32.totalorder %s19, 3
      %p51 = por %p49, %p50
      %p52 = scmp.ne.s32.totalorder %s41, %s42
      %p53 = scmp.eq.s32.totalorder %s19, 0
      %p54 = por %p52, %p53
      %p55 = scmp.ne.s32.totalorder %s41, %s42
      %p56 = scmp.eq.s32.totalorder %s20, 3
      %p57 = por %p55, %p56
      %p59 = scmp.ne.s32.totalorder %s42, %s58
      %p60 = scmp.eq.s32.totalorder %s20, 0
      %p61 = por %p59, %p60
      %s63 = sadd.s32 %s62, 1
      %p66 = scmp.eq.s32.totalorder %s14, 3
      %p67 = scmp.ne.s32.totalorder %s62, %s64
      %p68 = scmp.eq.s32.totalorder %s14, 0
      %p69 = por %p67, %p68
      %p70 = scmp.ne.s32.totalorder %s62, %s64
      %p71 = scmp.eq.s32.totalorder %s19, 3
      %p72 = por %p70, %p71
      %p73 = scmp.ne.s32.totalorder %s64, %s65
      %p74 = scmp.eq.s32.totalorder %s19, 0
      %p75 = por %p73, %p74
      %p76 = scmp.ne.s32.totalorder %s64, %s65
      %p77 = scmp.eq.s32.totalorder %s20, 3
      %p78 = por %p76, %p77
      %p80 = scmp.ne.s32.totalorder %s65, %s79
      %p81 = scmp.eq.s32.totalorder %s20, 0
      %p82 = por %p80, %p81
      %s84 = sadd.s32 %s83, 1
      %p87 = scmp.eq.s32.totalorder %s14, 3
      %p88 = scmp.ne.s32.totalorder %s83, %s85
      %p89 = scmp.eq.s32.totalorder %s14, 0
      %p90 = por %p88, %p89
      %p91 = scmp.ne.s32.totalorder %s83, %s85
      %p92 = scmp.eq.s32.totalorder %s19, 3
      %p93 = por %p91, %p92
      %p94 = scmp.ne.s32.totalorder %s85, %s86
      %p95 = scmp.eq.s32.totalorder %s19, 0
      %p96 = por %p94, %p95
      %p97 = scmp.ne.s32.totalorder %s85, %s86
      %p98 = scmp.eq.s32.totalorder %s20, 3
      %p99 = por %p97, %p98
      %p101 = scmp.ne.s32.totalorder %s86, %s100
      %p102 = scmp.eq.s32.totalorder %s20, 0
      %p103 = por %p101, %p102
      %s105 = sadd.s32 %s104, 1
      %p108 = scmp.eq.s32.totalorder %s14, 3
      %p109 = scmp.ne.s32.totalorder %s104, %s106
      %p110 = scmp.eq.s32.totalorder %s14, 0
      %p111 = por %p109, %p110
      %p112 = scmp.ne.s32.totalorder %s104, %s106
      %p113 = scmp.eq.s32.totalorder %s19, 3
      %p114 = por %p112, %p113
      %p115 = scmp.ne.s32.totalorder %s106, %s107
      %p116 = scmp.eq.s32.totalorder %s19, 0
      %p117 = por %p115, %p116
      %p118 = scmp.ne.s32.totalorder %s106, %s107
      %p119 = scmp.eq.s32.totalorder %s20, 3
      %p120 = por %p118, %p119
      %p122 = scmp.ne.s32.totalorder %s107, %s121
      %p123 = scmp.eq.s32.totalorder %s20, 0
      %p124 = por %p122, %p123
      %s126 = sadd.s32 %s125, 1
      %p129 = scmp.eq.s32.totalorder %s14, 3
      %p130 = scmp.ne.s32.totalorder %s125, %s127
      %p131 = scmp.eq.s32.totalorder %s14, 0
      %p132 = por %p130, %p131
      %p133 = scmp.ne.s32.totalorder %s125, %s127
      %p134 = scmp.eq.s32.totalorder %s19, 3
      %p135 = por %p133, %p134
      %p136 = scmp.ne.s32.totalorder %s127, %s128
      %p137 = scmp.eq.s32.totalorder %s19, 0
      %p138 = por %p136, %p137
      %p139 = scmp.ne.s32.totalorder %s127, %s128
      %p140 = scmp.eq.s32.totalorder %s20, 3
      %p141 = por %p139, %p140
      %p143 = scmp.ne.s32.totalorder %s128, %s142
      %p144 = scmp.eq.s32.totalorder %s20, 0
      %p145 = por %p143, %p144
      %s146 = ssub.s32 %s21, %s33
      %s147 = ssub.s32 %s22, %s29
      %s148 = sor.u32 %s146, %s147
      %p149 = scmp.eq.s32.totalorder %s148, 0
      %s151 = sadd.s32 %s150, 1
      %s152 = scalar_select %p149, %s150, %s151
      %p155 = pneg %p149
      %p156 = scmp.eq.s32.totalorder %s14, 3
      %p157 = por %p155, %p156
      %p158 = scmp.ne.s32.totalorder %s150, %s153
      %p159 = scmp.eq.s32.totalorder %s14, 0
      %p160 = por %p158, %p159
      %p161 = scmp.ne.s32.totalorder %s150, %s153
      %p162 = scmp.eq.s32.totalorder %s19, 3
      %p163 = por %p161, %p162
      %p164 = scmp.ne.s32.totalorder %s153, %s154
      %p165 = scmp.eq.s32.totalorder %s19, 0
      %p166 = por %p164, %p165
      %p167 = scmp.ne.s32.totalorder %s153, %s154
      %p168 = scmp.eq.s32.totalorder %s20, 3
      %p169 = por %p167, %p168
      %p171 = scmp.ne.s32.totalorder %s154, %s170
      %p172 = scmp.eq.s32.totalorder %s20, 0
      %p173 = por %p171, %p172
      %p174 = scmp.le.s32.totalorder 1, %s14
      %p175 = scmp.lt.s32.totalorder %s14, 5
      %p176 = pnand %p174, %p175
      %p177 = pneg %p176
      // Predicated region
      $region9: #{tpu_custom_call.1} parent=5 // pred_check
        _
      $region10: #{tpu_custom_call.1} parent=5 // pred_check_branch
        %179 = sbr.rel (%p176) target = $region12
      $region11: #{tpu_custom_call.1} parent=5 // pred_region
        %s180 = ssub.s32 %s14, 1
        // Predicated region
        $region13: #{tpu_custom_call.1} parent=11 // pred_check
          %p181 = pneg %p75
        $region14: #{tpu_custom_call.1} parent=11 // pred_check_branch
          %183 = sbr.rel (%p181) target = $region16
        $region15: #{tpu_custom_call.1} parent=11 // pred_region
          _
        $region16: #{tpu_custom_call.1} parent=11 // pred_fallthru
          _
        // Predicated region
        $region17: #{tpu_custom_call.1} parent=11 // pred_check
          %p184 = pneg %p96
        $region18: #{tpu_custom_call.1} parent=11 // pred_check_branch
          %186 = sbr.rel (%p184) target = $region20
        $region19: #{tpu_custom_call.1} parent=11 // pred_region
          _
        $region20: #{tpu_custom_call.1} parent=11 // pred_fallthru
          _
        // Predicated region
        $region21: #{tpu_custom_call.1} parent=11 // pred_check
          %p187 = pneg %p117
        $region22: #{tpu_custom_call.1} parent=11 // pred_check_branch
          %189 = sbr.rel (%p187) target = $region24
        $region23: #{tpu_custom_call.1} parent=11 // pred_region
          _
        $region24: #{tpu_custom_call.1} parent=11 // pred_fallthru
          _
        // Predicated region
        $region25: #{tpu_custom_call.1} parent=11 // pred_check
          %p190 = pneg %p138
        $region26: #{tpu_custom_call.1} parent=11 // pred_check_branch
          %192 = sbr.rel (%p190) target = $region28
        $region27: #{tpu_custom_call.1} parent=11 // pred_region
          _
        $region28: #{tpu_custom_call.1} parent=11 // pred_fallthru
          _
      $region12: #{tpu_custom_call.1} parent=5 // pred_fallthru
        _
      %p193 = scmp.lt.s32.totalorder %s14, 4
      // Predicated region
      $region29: #{tpu_custom_call.1} parent=5 // pred_check
        %p194 = pneg %p193
      $region30: #{tpu_custom_call.1} parent=5 // pred_check_branch
        %196 = sbr.rel (%p194) target = $region32
      $region31: #{tpu_custom_call.1} parent=5 // pred_region
        // Predicated region
        $region33: #{tpu_custom_call.1} parent=31 // pred_check
          %p197 = pneg %p48
        $region34: #{tpu_custom_call.1} parent=31 // pred_check_branch
          %199 = sbr.rel (%p197) target = $region36
        $region35: #{tpu_custom_call.1} parent=31 // pred_region
          %s200 = smul.u32 2, %s22
          %p201 = scmp.lt.s32.totalorder %s21, 1
          %s202 = scalar_select %p201, %s21, 1
          %p203 = scmp.lt.s32.totalorder %s200, 3
          %s204 = scalar_select %p203, %s200, 3
          %s205 = smul.addr %s202, 4
          %s206 = sadd.s32 %s204, %s205
          %s207 = smul.addr %s206, 4
          %s208 = scalar_lea.vmem %s0, %s207
          %s209 = smul.u32 2, %s22
        $region36: #{tpu_custom_call.1} parent=31 // pred_fallthru
          _
      $region32: #{tpu_custom_call.1} parent=5 // pred_fallthru
        _
      %p210 = scmp.le.s32.totalorder 1, %s14
      %p211 = scmp.lt.s32.totalorder %s14, 5
      %p212 = pnand %p210, %p211
      %p213 = pneg %p212
      // Predicated region
      $region37: #{tpu_custom_call.1} parent=5 // pred_check
        _
      $region38: #{tpu_custom_call.1} parent=5 // pred_check_branch
        %215 = sbr.rel (%p212) target = $region40
      $region39: #{tpu_custom_call.1} parent=5 // pred_region
        %s216 = ssub.s32 %s14, 1
        %s217 = smul.u32 2, %s24
        %p218 = scmp.lt.s32.totalorder %s23, 1
        %s219 = scalar_select %p218, %s23, 1
        %p220 = scmp.lt.s32.totalorder %s217, 3
        %s221 = scalar_select %p220, %s217, 3
        %s222 = smul.addr %s219, 4
        %s223 = sadd.s32 %s221, %s222
        %s224 = smul.addr %s223, 4
        %s225 = scalar_lea.vmem %s0, %s224
        %p226 = pneg %p54
        %p227 = pneg %p51
        %p228 = pneg %p75
        %p229 = pneg %p72
        %p230 = pneg %p96
        %p231 = pneg %p93
        %p232 = pneg %p117
        %p233 = pneg %p114
        %p234 = pneg %p138
        %p235 = pneg %p135
        %p236 = pneg %p166
        %p237 = pneg %p163
        %s238 = sand.u32 %s153, 1
        %s239 = scalar_lea.sflag [#allocation3], %s238
        %s240 = sand.u32 %s153, 1
        %s241 = smul.addr %s240, 8
        %s242 = scalar_lea.vmem [#allocation2], %s241
        %s243 = smul.u32 2, %s24
        %p244 = scmp.lt.s32.totalorder %s23, 1
        %s245 = scalar_select %p244, %s23, 1
        %p246 = scmp.lt.s32.totalorder %s243, 3
        %s247 = scalar_select %p246, %s243, 3
        %s248 = smul.addr %s245, 4
        %s249 = sadd.s32 %s247, %s248
        %s250 = smul.addr %s249, 4
        %s251 = scalar_lea.vmem %s0, %s250
        %s252 = smul.u32 2, %s24
        %s253 = smul.u32 2, %s24
        %v254 = vld [vmem:[%s251] sm:$0xff]
        %v255 = vmul.f32 %v254, %v254
        %v256 = vld [vmem:[%s1] sm:$0xff]
        %v257 = vld [vmem:[%s1 + $0x8] sm:$0xff]
        %v258 = vld [vmem:[%s1 + $0x10] sm:$0xff]
        %v259 = vld [vmem:[%s1 + $0x18] sm:$0xff]
        %v260 = vld [vmem:[%s2] sm:$0xff]
        %v261 = vld [vmem:[%s2 + $0x8] sm:$0xff]
        %v262 = vld [vmem:[%s2 + $0x10] sm:$0xff]
        %v263 = vld [vmem:[%s2 + $0x18] sm:$0xff]
        %265 = vset.pattern.permute.xlu0 0
        %266 = vperm.xlu0 %265, %v260
        %v267 = vpop.permute.xlu0 %266
        %270 = vset.pattern.permute.xlu0 0
        %271 = vperm.xlu0 %270, %v261
        %v272 = vpop.permute.xlu0 %271
        %275 = vset.pattern.permute.xlu0 0
        %276 = vperm.xlu0 %275, %v262
        %v277 = vpop.permute.xlu0 %276
        %280 = vset.pattern.permute.xlu0 0
        %281 = vperm.xlu0 %280, %v263
        %v282 = vpop.permute.xlu0 %281
        %v285 = vcombine.high %v255, %v255
        %vm286 = vcmask 31744
        %v288 = vsel %vm286, %v256, 0
        %v291 = vsel %vm286, %v257, 0
        %v294 = vsel %vm286, %v258, 0
        %v297 = vsel %vm286, %v259, 0
        %vm299 = vcmask 1043456
        %v300 = vsel %vm299, %v255, 0
        %v302 = vsel %vm299, %v285, 0
        %v304 = vand.u32 %v302, 4294901760
        %305 = vmatprep.subr.mxu0 %v304
        %v306 = vand.u32 %v300, 4294901760
        %307 = vmatpush1.msra.mxu0 %v306
        %308 = vmatprep.subr.mxu0 0.0
        %309 = vmatpush1.msra.mxu0 0.0
        %310 = vmatprep.subr.mxu0 0.0
        %311 = vmatpush1.msra.mxu0 0.0
        %312 = vmatprep.subr.mxu0 0.0
        %313 = vmatpush1.msra.mxu0 0.0
        %314 = vmatprep.subr.mxu0 0.0
        %315 = vmatpush1.msra.mxu0 0.0
        %316 = vmatprep.subr.mxu0 0.0
        %317 = vmatpush1.msra.mxu0 0.0
        %318 = vmatprep.subr.mxu0 0.0
        %319 = vmatpush1.msra.mxu0 0.0
        %320 = vmatprep.subr.mxu0 0.0
        %321 = vmatpush1.msra.mxu0 0.0
        %322 = vmatprep.subr.mxu0 0.0
        %323 = vmatpush1.msra.mxu0 0.0
        %324 = vmatprep.subr.mxu0 0.0
        %325 = vmatpush1.msra.mxu0 0.0
        %326 = vmatprep.subr.mxu0 0.0
        %327 = vmatpush1.msra.mxu0 0.0
        %328 = vmatprep.subr.mxu0 0.0
        %329 = vmatpush1.msra.mxu0 0.0
        %330 = vmatprep.subr.mxu0 0.0
        %331 = vmatpush1.msra.mxu0 0.0
        %332 = vmatprep.subr.mxu0 0.0
        %333 = vmatpush1.msra.mxu0 0.0
        %334 = vmatprep.subr.mxu0 0.0
        %335 = vmatpush1.msra.mxu0 0.0
        %336 = vmatprep.subr.mxu0 0.0
        %337 = vmatpush1.msra.mxu0 0.0
        %338 = vmatprep.subr.mxu0 0.0
        %339 = vmatpush1.msra.mxu0 0.0
        %340 = vmatprep.subr.mxu0 0.0
        %341 = vmatpush1.msra.mxu0 0.0
        %342 = vmatprep.subr.mxu0 0.0
        %343 = vmatpush1.msra.mxu0 0.0
        %344 = vmatprep.subr.mxu0 0.0
        %345 = vmatpush1.msra.mxu0 0.0
        %346 = vmatprep.subr.mxu0 0.0
        %347 = vmatpush1.msra.mxu0 0.0
        %348 = vmatprep.subr.mxu0 0.0
        %349 = vmatpush1.msra.mxu0 0.0
        %350 = vmatprep.subr.mxu0 0.0
        %351 = vmatpush1.msra.mxu0 0.0
        %352 = vmatprep.subr.mxu0 0.0
        %353 = vmatpush1.msra.mxu0 0.0
        %354 = vmatprep.subr.mxu0 0.0
        %355 = vmatpush1.msra.mxu0 0.0
        %356 = vmatprep.subr.mxu0 0.0
        %357 = vmatpush1.msra.mxu0 0.0
        %358 = vmatprep.subr.mxu0 0.0
        %359 = vmatpush1.msra.mxu0 0.0
        %360 = vmatprep.subr.mxu0 0.0
        %361 = vmatpush1.msra.mxu0 0.0
        %362 = vmatprep.subr.mxu0 0.0
        %363 = vmatpush1.msra.mxu0 0.0
        %364 = vmatprep.subr.mxu0 0.0
        %365 = vmatpush1.msra.mxu0 0.0
        %366 = vmatprep.subr.mxu0 0.0
        %367 = vmatpush1.msra.mxu0 0.0
        %368 = vmatprep.subr.mxu0 0.0
        %369 = vmatpush1.msra.mxu0 0.0
        %370 = vmatprep.mubr.f32.mxu0 0.0
        %v371 = vand.u32 %v288, 4294901760
        %v372 = vsub.f32 %v288, %v371
        %v373 = vand.u32 %v372, 4294901760
        %v374 = vsub.f32 %v372, %v373
        %v375 = vand.u32 %v374, 4294901760
        %376 = vmatmul.mubr.f32.gmra.mrb[0].mxu0 %v375
        %v377 = vpop.f32.mrb[0].mxu0
        %v378 = vadd.f32 %v267, %v377
        %v379 = vpop.f32.mrb[0].mxu0
        %v380 = vadd.f32 %v267, %v379
        %381 = vmatprep.mubr.f32.mxu0 0.0
        %v382 = vand.u32 %v291, 4294901760
        %v383 = vsub.f32 %v291, %v382
        %v384 = vand.u32 %v383, 4294901760
        %v385 = vsub.f32 %v383, %v384
        %v386 = vand.u32 %v385, 4294901760
        %387 = vmatmul.mubr.f32.gmra.mrb[0].mxu0 %v386
        %v388 = vpop.f32.mrb[0].mxu0
        %v389 = vadd.f32 %v272, %v388
        %v390 = vpop.f32.mrb[0].mxu0
        %v391 = vadd.f32 %v272, %v390
        %392 = vmatprep.mubr.f32.mxu0 0.0
        %v393 = vand.u32 %v294, 4294901760
        %v394 = vsub.f32 %v294, %v393
        %v395 = vand.u32 %v394, 4294901760
        %v396 = vsub.f32 %v394, %v395
        %v397 = vand.u32 %v396, 4294901760
        %398 = vmatmul.mubr.f32.gmra.mrb[0].mxu0 %v397
        %v399 = vpop.f32.mrb[0].mxu0
        %v400 = vadd.f32 %v277, %v399
        %v401 = vpop.f32.mrb[0].mxu0
        %v402 = vadd.f32 %v277, %v401
        %403 = vmatprep.mubr.f32.mxu0 0.0
        %v404 = vand.u32 %v297, 4294901760
        %v405 = vsub.f32 %v297, %v404
        %v406 = vand.u32 %v405, 4294901760
        %v407 = vsub.f32 %v405, %v406
        %v408 = vand.u32 %v407, 4294901760
        %409 = vmatmul.mubr.f32.gmra.mrb[0].mxu0 %v408
        %v410 = vpop.f32.mrb[0].mxu0
        %v411 = vadd.f32 %v282, %v410
        %v412 = vpop.f32.mrb[0].mxu0
        %v413 = vadd.f32 %v282, %v412
        %414 = vdwg.mxu0
        %v415 = vand.u32 %v302, 4294901760
        %v416 = vsub.f32 %v302, %v415
        %v417 = vand.u32 %v416, 4294901760
        %v418 = vsub.f32 %v416, %v417
        %v419 = vand.u32 %v418, 4294901760
        %420 = vmatprep.subr.mxu0 %v419
        %v421 = vand.u32 %v300, 4294901760
        %v422 = vsub.f32 %v300, %v421
        %v423 = vand.u32 %v422, 4294901760
        %v424 = vsub.f32 %v422, %v423
        %v425 = vand.u32 %v424, 4294901760
        %426 = vmatpush1.msra.mxu0 %v425
        %427 = vmatprep.subr.mxu0 0.0
        %428 = vmatpush1.msra.mxu0 0.0
        %429 = vmatprep.subr.mxu0 0.0
        %430 = vmatpush1.msra.mxu0 0.0
        %431 = vmatprep.subr.mxu0 0.0
        %432 = vmatpush1.msra.mxu0 0.0
        %433 = vmatprep.subr.mxu0 0.0
        %434 = vmatpush1.msra.mxu0 0.0
        %435 = vmatprep.subr.mxu0 0.0
        %436 = vmatpush1.msra.mxu0 0.0
        %437 = vmatprep.subr.mxu0 0.0
        %438 = vmatpush1.msra.mxu0 0.0
        %439 = vmatprep.subr.mxu0 0.0
        %440 = vmatpush1.msra.mxu0 0.0
        %441 = vmatprep.subr.mxu0 0.0
        %442 = vmatpush1.msra.mxu0 0.0
        %443 = vmatprep.subr.mxu0 0.0
        %444 = vmatpush1.msra.mxu0 0.0
        %445 = vmatprep.subr.mxu0 0.0
        %446 = vmatpush1.msra.mxu0 0.0
        %447 = vmatprep.subr.mxu0 0.0
        %448 = vmatpush1.msra.mxu0 0.0
        %449 = vmatprep.subr.mxu0 0.0
        %450 = vmatpush1.msra.mxu0 0.0
        %451 = vmatprep.subr.mxu0 0.0
        %452 = vmatpush1.msra.mxu0 0.0
        %453 = vmatprep.subr.mxu0 0.0
        %454 = vmatpush1.msra.mxu0 0.0
        %455 = vmatprep.subr.mxu0 0.0
        %456 = vmatpush1.msra.mxu0 0.0
        %457 = vmatprep.subr.mxu0 0.0
        %458 = vmatpush1.msra.mxu0 0.0
        %459 = vmatprep.subr.mxu0 0.0
        %460 = vmatpush1.msra.mxu0 0.0
        %461 = vmatprep.subr.mxu0 0.0
        %462 = vmatpush1.msra.mxu0 0.0
        %463 = vmatprep.subr.mxu0 0.0
        %464 = vmatpush1.msra.mxu0 0.0
        %465 = vmatprep.subr.mxu0 0.0
        %466 = vmatpush1.msra.mxu0 0.0
        %467 = vmatprep.subr.mxu0 0.0
        %468 = vmatpush1.msra.mxu0 0.0
        %469 = vmatprep.subr.mxu0 0.0
        %470 = vmatpush1.msra.mxu0 0.0
        %471 = vmatprep.subr.mxu0 0.0
        %472 = vmatpush1.msra.mxu0 0.0
        %473 = vmatprep.subr.mxu0 0.0
        %474 = vmatpush1.msra.mxu0 0.0
        %475 = vmatprep.subr.mxu0 0.0
        %476 = vmatpush1.msra.mxu0 0.0
        %477 = vmatprep.subr.mxu0 0.0
        %478 = vmatpush1.msra.mxu0 0.0
        %479 = vmatprep.subr.mxu0 0.0
        %480 = vmatpush1.msra.mxu0 0.0
        %481 = vmatprep.subr.mxu0 0.0
        %482 = vmatpush1.msra.mxu0 0.0
        %483 = vmatprep.subr.mxu0 0.0
        %484 = vmatpush1.msra.mxu0 0.0
        %485 = vmatprep.subr.mxu0 0.0
        %486 = vmatpush1.msra.mxu0 0.0
        %487 = vmatprep.subr.mxu0 0.0
        %488 = vmatpush1.msra.mxu0 0.0
        %489 = vmatprep.mubr.f32.mxu0 0.0
        %v490 = vand.u32 %v288, 4294901760
        %491 = vmatmul.mubr.f32.gmra.mrb[0].mxu0 %v490
        %v492 = vpop.f32.mrb[0].mxu0
        %v493 = vadd.f32 %v378, %v492
        %v494 = vpop.f32.mrb[0].mxu0
        %v495 = vadd.f32 %v380, %v494
        %496 = vmatprep.mubr.f32.mxu0 0.0
        %v497 = vand.u32 %v291, 4294901760
        %498 = vmatmul.mubr.f32.gmra.mrb[0].mxu0 %v497
        %v499 = vpop.f32.mrb[0].mxu0
        %v500 = vadd.f32 %v389, %v499
        %v501 = vpop.f32.mrb[0].mxu0
        %v502 = vadd.f32 %v391, %v501
        %503 = vmatprep.mubr.f32.mxu0 0.0
        %v504 = vand.u32 %v294, 4294901760
        %505 = vmatmul.mubr.f32.gmra.mrb[0].mxu0 %v504
        %v506 = vpop.f32.mrb[0].mxu0
        %v507 = vadd.f32 %v400, %v506
        %v508 = vpop.f32.mrb[0].mxu0
        %v509 = vadd.f32 %v402, %v508
        %510 = vmatprep.mubr.f32.mxu0 0.0
        %v511 = vand.u32 %v297, 4294901760
        %512 = vmatmul.mubr.f32.gmra.mrb[0].mxu0 %v511
        %v513 = vpop.f32.mrb[0].mxu0
        %v514 = vadd.f32 %v411, %v513
        %v515 = vpop.f32.mrb[0].mxu0
        %v516 = vadd.f32 %v413, %v515
        %517 = vdwg.mxu0
        %v518 = vand.u32 %v302, 4294901760
        %v519 = vsub.f32 %v302, %v518
        %520 = vmatprep.subr.mxu0 %v519
        %v521 = vand.u32 %v300, 4294901760
        %v522 = vsub.f32 %v300, %v521
        %523 = vmatpush1.msra.mxu0 %v522
        %524 = vmatprep.subr.mxu0 0.0
        %525 = vmatpush1.msra.mxu0 0.0
        %526 = vmatprep.subr.mxu0 0.0
        %527 = vmatpush1.msra.mxu0 0.0
        %528 = vmatprep.subr.mxu0 0.0
        %529 = vmatpush1.msra.mxu0 0.0
        %530 = vmatprep.subr.mxu0 0.0
        %531 = vmatpush1.msra.mxu0 0.0
        %532 = vmatprep.subr.mxu0 0.0
        %533 = vmatpush1.msra.mxu0 0.0
        %534 = vmatprep.subr.mxu0 0.0
        %535 = vmatpush1.msra.mxu0 0.0
        %536 = vmatprep.subr.mxu0 0.0
        %537 = vmatpush1.msra.mxu0 0.0
        %538 = vmatprep.subr.mxu0 0.0
        %539 = vmatpush1.msra.mxu0 0.0
        %540 = vmatprep.subr.mxu0 0.0
        %541 = vmatpush1.msra.mxu0 0.0
        %542 = vmatprep.subr.mxu0 0.0
        %543 = vmatpush1.msra.mxu0 0.0
        %544 = vmatprep.subr.mxu0 0.0
        %545 = vmatpush1.msra.mxu0 0.0
        %546 = vmatprep.subr.mxu0 0.0
        %547 = vmatpush1.msra.mxu0 0.0
        %548 = vmatprep.subr.mxu0 0.0
        %549 = vmatpush1.msra.mxu0 0.0
        %550 = vmatprep.subr.mxu0 0.0
        %551 = vmatpush1.msra.mxu0 0.0
        %552 = vmatprep.subr.mxu0 0.0
        %553 = vmatpush1.msra.mxu0 0.0
        %554 = vmatprep.subr.mxu0 0.0
        %555 = vmatpush1.msra.mxu0 0.0
        %556 = vmatprep.subr.mxu0 0.0
        %557 = vmatpush1.msra.mxu0 0.0
        %558 = vmatprep.subr.mxu0 0.0
        %559 = vmatpush1.msra.mxu0 0.0
        %560 = vmatprep.subr.mxu0 0.0
        %561 = vmatpush1.msra.mxu0 0.0
        %562 = vmatprep.subr.mxu0 0.0
        %563 = vmatpush1.msra.mxu0 0.0
        %564 = vmatprep.subr.mxu0 0.0
        %565 = vmatpush1.msra.mxu0 0.0
        %566 = vmatprep.subr.mxu0 0.0
        %567 = vmatpush1.msra.mxu0 0.0
        %568 = vmatprep.subr.mxu0 0.0
        %569 = vmatpush1.msra.mxu0 0.0
        %570 = vmatprep.subr.mxu0 0.0
        %571 = vmatpush1.msra.mxu0 0.0
        %572 = vmatprep.subr.mxu0 0.0
        %573 = vmatpush1.msra.mxu0 0.0
        %574 = vmatprep.subr.mxu0 0.0
        %575 = vmatpush1.msra.mxu0 0.0
        %576 = vmatprep.subr.mxu0 0.0
        %577 = vmatpush1.msra.mxu0 0.0
        %578 = vmatprep.subr.mxu0 0.0
        %579 = vmatpush1.msra.mxu0 0.0
        %580 = vmatprep.subr.mxu0 0.0
        %581 = vmatpush1.msra.mxu0 0.0
        %582 = vmatprep.subr.mxu0 0.0
        %583 = vmatpush1.msra.mxu0 0.0
        %584 = vmatprep.subr.mxu0 0.0
        %585 = vmatpush1.msra.mxu0 0.0
        %586 = vmatprep.mubr.f32.mxu0 0.0
        %v587 = vand.u32 %v288, 4294901760
        %v588 = vsub.f32 %v288, %v587
        %589 = vmatmul.mubr.f32.gmra.mrb[0].mxu0 %v588
        %v590 = vpop.f32.mrb[0].mxu0
        %v591 = vadd.f32 %v493, %v590
        %v592 = vpop.f32.mrb[0].mxu0
        %v593 = vadd.f32 %v495, %v592
        %594 = vmatprep.mubr.f32.mxu0 0.0
        %v595 = vand.u32 %v291, 4294901760
        %v596 = vsub.f32 %v291, %v595
        %597 = vmatmul.mubr.f32.gmra.mrb[0].mxu0 %v596
        %v598 = vpop.f32.mrb[0].mxu0
        %v599 = vadd.f32 %v500, %v598
        %v600 = vpop.f32.mrb[0].mxu0
        %v601 = vadd.f32 %v502, %v600
        %602 = vmatprep.mubr.f32.mxu0 0.0
        %v603 = vand.u32 %v294, 4294901760
        %v604 = vsub.f32 %v294, %v603
        %605 = vmatmul.mubr.f32.gmra.mrb[0].mxu0 %v604
        %v606 = vpop.f32.mrb[0].mxu0
        %v607 = vadd.f32 %v507, %v606
        %v608 = vpop.f32.mrb[0].mxu0
        %v609 = vadd.f32 %v509, %v608
        %610 = vmatprep.mubr.f32.mxu0 0.0
        %v611 = vand.u32 %v297, 4294901760
        %v612 = vsub.f32 %v297, %v611
        %613 = vmatmul.mubr.f32.gmra.mrb[0].mxu0 %v612
        %v614 = vpop.f32.mrb[0].mxu0
        %v615 = vadd.f32 %v514, %v614
        %v616 = vpop.f32.mrb[0].mxu0
        %v617 = vadd.f32 %v516, %v616
        %618 = vdwg.mxu0
        %v619 = vand.u32 %v302, 4294901760
        %620 = vmatprep.subr.mxu0 %v619
        %v621 = vand.u32 %v300, 4294901760
        %622 = vmatpush1.msra.mxu0 %v621
        %623 = vmatprep.subr.mxu0 0.0
        %624 = vmatpush1.msra.mxu0 0.0
        %625 = vmatprep.subr.mxu0 0.0
        %626 = vmatpush1.msra.mxu0 0.0
        %627 = vmatprep.subr.mxu0 0.0
        %628 = vmatpush1.msra.mxu0 0.0
        %629 = vmatprep.subr.mxu0 0.0
        %630 = vmatpush1.msra.mxu0 0.0
        %631 = vmatprep.subr.mxu0 0.0
        %632 = vmatpush1.msra.mxu0 0.0
        %633 = vmatprep.subr.mxu0 0.0
        %634 = vmatpush1.msra.mxu0 0.0
        %635 = vmatprep.subr.mxu0 0.0
        %636 = vmatpush1.msra.mxu0 0.0
        %637 = vmatprep.subr.mxu0 0.0
        %638 = vmatpush1.msra.mxu0 0.0
        %639 = vmatprep.subr.mxu0 0.0
        %640 = vmatpush1.msra.mxu0 0.0
        %641 = vmatprep.subr.mxu0 0.0
        %642 = vmatpush1.msra.mxu0 0.0
        %643 = vmatprep.subr.mxu0 0.0
        %644 = vmatpush1.msra.mxu0 0.0
        %645 = vmatprep.subr.mxu0 0.0
        %646 = vmatpush1.msra.mxu0 0.0
        %647 = vmatprep.subr.mxu0 0.0
        %648 = vmatpush1.msra.mxu0 0.0
        %649 = vmatprep.subr.mxu0 0.0
        %650 = vmatpush1.msra.mxu0 0.0
        %651 = vmatprep.subr.mxu0 0.0
        %652 = vmatpush1.msra.mxu0 0.0
        %653 = vmatprep.subr.mxu0 0.0
        %654 = vmatpush1.msra.mxu0 0.0
        %655 = vmatprep.subr.mxu0 0.0
        %656 = vmatpush1.msra.mxu0 0.0
        %657 = vmatprep.subr.mxu0 0.0
        %658 = vmatpush1.msra.mxu0 0.0
        %659 = vmatprep.subr.mxu0 0.0
        %660 = vmatpush1.msra.mxu0 0.0
        %661 = vmatprep.subr.mxu0 0.0
        %662 = vmatpush1.msra.mxu0 0.0
        %663 = vmatprep.subr.mxu0 0.0
        %664 = vmatpush1.msra.mxu0 0.0
        %665 = vmatprep.subr.mxu0 0.0
        %666 = vmatpush1.msra.mxu0 0.0
        %667 = vmatprep.subr.mxu0 0.0
        %668 = vmatpush1.msra.mxu0 0.0
        %669 = vmatprep.subr.mxu0 0.0
        %670 = vmatpush1.msra.mxu0 0.0
        %671 = vmatprep.subr.mxu0 0.0
        %672 = vmatpush1.msra.mxu0 0.0
        %673 = vmatprep.subr.mxu0 0.0
        %674 = vmatpush1.msra.mxu0 0.0
        %675 = vmatprep.subr.mxu0 0.0
        %676 = vmatpush1.msra.mxu0 0.0
        %677 = vmatprep.subr.mxu0 0.0
        %678 = vmatpush1.msra.mxu0 0.0
        %679 = vmatprep.subr.mxu0 0.0
        %680 = vmatpush1.msra.mxu0 0.0
        %681 = vmatprep.subr.mxu0 0.0
        %682 = vmatpush1.msra.mxu0 0.0
        %683 = vmatprep.subr.mxu0 0.0
        %684 = vmatpush1.msra.mxu0 0.0
        %685 = vmatprep.mubr.f32.mxu0 0.0
        %v686 = vand.u32 %v288, 4294901760
        %v687 = vsub.f32 %v288, %v686
        %v688 = vand.u32 %v687, 4294901760
        %689 = vmatmul.mubr.f32.gmra.mrb[0].mxu0 %v688
        %v690 = vpop.f32.mrb[0].mxu0
        %v691 = vadd.f32 %v591, %v690
        %v692 = vpop.f32.mrb[0].mxu0
        %v693 = vadd.f32 %v593, %v692
        %694 = vmatprep.mubr.f32.mxu0 0.0
        %v695 = vand.u32 %v291, 4294901760
        %v696 = vsub.f32 %v291, %v695
        %v697 = vand.u32 %v696, 4294901760
        %698 = vmatmul.mubr.f32.gmra.mrb[0].mxu0 %v697
        %v699 = vpop.f32.mrb[0].mxu0
        %v700 = vadd.f32 %v599, %v699
        %v701 = vpop.f32.mrb[0].mxu0
        %v702 = vadd.f32 %v601, %v701
        %703 = vmatprep.mubr.f32.mxu0 0.0
        %v704 = vand.u32 %v294, 4294901760
        %v705 = vsub.f32 %v294, %v704
        %v706 = vand.u32 %v705, 4294901760
        %707 = vmatmul.mubr.f32.gmra.mrb[0].mxu0 %v706
        %v708 = vpop.f32.mrb[0].mxu0
        %v709 = vadd.f32 %v607, %v708
        %v710 = vpop.f32.mrb[0].mxu0
        %v711 = vadd.f32 %v609, %v710
        %712 = vmatprep.mubr.f32.mxu0 0.0
        %v713 = vand.u32 %v297, 4294901760
        %v714 = vsub.f32 %v297, %v713
        %v715 = vand.u32 %v714, 4294901760
        %716 = vmatmul.mubr.f32.gmra.mrb[0].mxu0 %v715
        %v717 = vpop.f32.mrb[0].mxu0
        %v718 = vadd.f32 %v615, %v717
        %v719 = vpop.f32.mrb[0].mxu0
        %v720 = vadd.f32 %v617, %v719
        %721 = vdwg.mxu0
        %v722 = vand.u32 %v302, 4294901760
        %v723 = vsub.f32 %v302, %v722
        %v724 = vand.u32 %v723, 4294901760
        %725 = vmatprep.subr.mxu0 %v724
        %v726 = vand.u32 %v300, 4294901760
        %v727 = vsub.f32 %v300, %v726
        %v728 = vand.u32 %v727, 4294901760
        %729 = vmatpush1.msra.mxu0 %v728
        %730 = vmatprep.subr.mxu0 0.0
        %731 = vmatpush1.msra.mxu0 0.0
        %732 = vmatprep.subr.mxu0 0.0
        %733 = vmatpush1.msra.mxu0 0.0
        %734 = vmatprep.subr.mxu0 0.0
        %735 = vmatpush1.msra.mxu0 0.0
        %736 = vmatprep.subr.mxu0 0.0
        %737 = vmatpush1.msra.mxu0 0.0
        %738 = vmatprep.subr.mxu0 0.0
        %739 = vmatpush1.msra.mxu0 0.0
        %740 = vmatprep.subr.mxu0 0.0
        %741 = vmatpush1.msra.mxu0 0.0
        %742 = vmatprep.subr.mxu0 0.0
        %743 = vmatpush1.msra.mxu0 0.0
        %744 = vmatprep.subr.mxu0 0.0
        %745 = vmatpush1.msra.mxu0 0.0
        %746 = vmatprep.subr.mxu0 0.0
        %747 = vmatpush1.msra.mxu0 0.0
        %748 = vmatprep.subr.mxu0 0.0
        %749 = vmatpush1.msra.mxu0 0.0
        %750 = vmatprep.subr.mxu0 0.0
        %751 = vmatpush1.msra.mxu0 0.0
        %752 = vmatprep.subr.mxu0 0.0
        %753 = vmatpush1.msra.mxu0 0.0
        %754 = vmatprep.subr.mxu0 0.0
        %755 = vmatpush1.msra.mxu0 0.0
        %756 = vmatprep.subr.mxu0 0.0
        %757 = vmatpush1.msra.mxu0 0.0
        %758 = vmatprep.subr.mxu0 0.0
        %759 = vmatpush1.msra.mxu0 0.0
        %760 = vmatprep.subr.mxu0 0.0
        %761 = vmatpush1.msra.mxu0 0.0
        %762 = vmatprep.subr.mxu0 0.0
        %763 = vmatpush1.msra.mxu0 0.0
        %764 = vmatprep.subr.mxu0 0.0
        %765 = vmatpush1.msra.mxu0 0.0
        %766 = vmatprep.subr.mxu0 0.0
        %767 = vmatpush1.msra.mxu0 0.0
        %768 = vmatprep.subr.mxu0 0.0
        %769 = vmatpush1.msra.mxu0 0.0
        %770 = vmatprep.subr.mxu0 0.0
        %771 = vmatpush1.msra.mxu0 0.0
        %772 = vmatprep.subr.mxu0 0.0
        %773 = vmatpush1.msra.mxu0 0.0
        %774 = vmatprep.subr.mxu0 0.0
        %775 = vmatpush1.msra.mxu0 0.0
        %776 = vmatprep.subr.mxu0 0.0
        %777 = vmatpush1.msra.mxu0 0.0
        %778 = vmatprep.subr.mxu0 0.0
        %779 = vmatpush1.msra.mxu0 0.0
        %780 = vmatprep.subr.mxu0 0.0
        %781 = vmatpush1.msra.mxu0 0.0
        %782 = vmatprep.subr.mxu0 0.0
        %783 = vmatpush1.msra.mxu0 0.0
        %784 = vmatprep.subr.mxu0 0.0
        %785 = vmatpush1.msra.mxu0 0.0
        %786 = vmatprep.subr.mxu0 0.0
        %787 = vmatpush1.msra.mxu0 0.0
        %788 = vmatprep.subr.mxu0 0.0
        %789 = vmatpush1.msra.mxu0 0.0
        %790 = vmatprep.subr.mxu0 0.0
        %791 = vmatpush1.msra.mxu0 0.0
        %792 = vmatprep.mubr.f32.mxu0 0.0
        %v793 = vand.u32 %v288, 4294901760
        %794 = vmatmul.mubr.f32.gmra.mrb[0].mxu0 %v793
        %v795 = vpop.f32.mrb[0].mxu0
        %v796 = vadd.f32 %v691, %v795
        %v797 = vpop.f32.mrb[0].mxu0
        %v798 = vadd.f32 %v693, %v797
        %799 = vmatprep.mubr.f32.mxu0 0.0
        %v800 = vand.u32 %v291, 4294901760
        %801 = vmatmul.mubr.f32.gmra.mrb[0].mxu0 %v800
        %v802 = vpop.f32.mrb[0].mxu0
        %v803 = vadd.f32 %v700, %v802
        %v804 = vpop.f32.mrb[0].mxu0
        %v805 = vadd.f32 %v702, %v804
        %806 = vmatprep.mubr.f32.mxu0 0.0
        %v807 = vand.u32 %v294, 4294901760
        %808 = vmatmul.mubr.f32.gmra.mrb[0].mxu0 %v807
        %v809 = vpop.f32.mrb[0].mxu0
        %v810 = vadd.f32 %v709, %v809
        %v811 = vpop.f32.mrb[0].mxu0
        %v812 = vadd.f32 %v711, %v811
        %813 = vmatprep.mubr.f32.mxu0 0.0
        %v814 = vand.u32 %v297, 4294901760
        %815 = vmatmul.mubr.f32.gmra.mrb[0].mxu0 %v814
        %v816 = vpop.f32.mrb[0].mxu0
        %v817 = vadd.f32 %v718, %v816
        %v818 = vpop.f32.mrb[0].mxu0
        %v819 = vadd.f32 %v720, %v818
        %820 = vdwg.mxu0
        %v821 = vand.u32 %v302, 4294901760
        %822 = vmatprep.subr.mxu0 %v821
        %v823 = vand.u32 %v300, 4294901760
        %824 = vmatpush1.msra.mxu0 %v823
        %825 = vmatprep.subr.mxu0 0.0
        %826 = vmatpush1.msra.mxu0 0.0
        %827 = vmatprep.subr.mxu0 0.0
        %828 = vmatpush1.msra.mxu0 0.0
        %829 = vmatprep.subr.mxu0 0.0
        %830 = vmatpush1.msra.mxu0 0.0
        %831 = vmatprep.subr.mxu0 0.0
        %832 = vmatpush1.msra.mxu0 0.0
        %833 = vmatprep.subr.mxu0 0.0
        %834 = vmatpush1.msra.mxu0 0.0
        %835 = vmatprep.subr.mxu0 0.0
        %836 = vmatpush1.msra.mxu0 0.0
        %837 = vmatprep.subr.mxu0 0.0
        %838 = vmatpush1.msra.mxu0 0.0
        %839 = vmatprep.subr.mxu0 0.0
        %840 = vmatpush1.msra.mxu0 0.0
        %841 = vmatprep.subr.mxu0 0.0
        %842 = vmatpush1.msra.mxu0 0.0
        %843 = vmatprep.subr.mxu0 0.0
        %844 = vmatpush1.msra.mxu0 0.0
        %845 = vmatprep.subr.mxu0 0.0
        %846 = vmatpush1.msra.mxu0 0.0
        %847 = vmatprep.subr.mxu0 0.0
        %848 = vmatpush1.msra.mxu0 0.0
        %849 = vmatprep.subr.mxu0 0.0
        %850 = vmatpush1.msra.mxu0 0.0
        %851 = vmatprep.subr.mxu0 0.0
        %852 = vmatpush1.msra.mxu0 0.0
        %853 = vmatprep.subr.mxu0 0.0
        %854 = vmatpush1.msra.mxu0 0.0
        %855 = vmatprep.subr.mxu0 0.0
        %856 = vmatpush1.msra.mxu0 0.0
        %857 = vmatprep.subr.mxu0 0.0
        %858 = vmatpush1.msra.mxu0 0.0
        %859 = vmatprep.subr.mxu0 0.0
        %860 = vmatpush1.msra.mxu0 0.0
        %861 = vmatprep.subr.mxu0 0.0
        %862 = vmatpush1.msra.mxu0 0.0
        %863 = vmatprep.subr.mxu0 0.0
        %864 = vmatpush1.msra.mxu0 0.0
        %865 = vmatprep.subr.mxu0 0.0
        %866 = vmatpush1.msra.mxu0 0.0
        %867 = vmatprep.subr.mxu0 0.0
        %868 = vmatpush1.msra.mxu0 0.0
        %869 = vmatprep.subr.mxu0 0.0
        %870 = vmatpush1.msra.mxu0 0.0
        %871 = vmatprep.subr.mxu0 0.0
        %872 = vmatpush1.msra.mxu0 0.0
        %873 = vmatprep.subr.mxu0 0.0
        %874 = vmatpush1.msra.mxu0 0.0
        %875 = vmatprep.subr.mxu0 0.0
        %876 = vmatpush1.msra.mxu0 0.0
        %877 = vmatprep.subr.mxu0 0.0
        %878 = vmatpush1.msra.mxu0 0.0
        %879 = vmatprep.subr.mxu0 0.0
        %880 = vmatpush1.msra.mxu0 0.0
        %881 = vmatprep.subr.mxu0 0.0
        %882 = vmatpush1.msra.mxu0 0.0
        %883 = vmatprep.subr.mxu0 0.0
        %884 = vmatpush1.msra.mxu0 0.0
        %885 = vmatprep.subr.mxu0 0.0
        %886 = vmatpush1.msra.mxu0 0.0
        %887 = vmatprep.mubr.f32.mxu0 0.0
        %v888 = vand.u32 %v288, 4294901760
        %889 = vmatmul.mubr.f32.gmra.mrb[0].mxu0 %v888
        %v890 = vpop.f32.mrb[0].mxu0
        %v891 = vadd.f32 %v796, %v890
        %v892 = vpop.f32.mrb[0].mxu0
        %v893 = vadd.f32 %v798, %v892
        %894 = vmatprep.mubr.f32.mxu0 0.0
        %v895 = vand.u32 %v291, 4294901760
        %896 = vmatmul.mubr.f32.gmra.mrb[0].mxu0 %v895
        %v897 = vpop.f32.mrb[0].mxu0
        %v898 = vadd.f32 %v803, %v897
        %v899 = vpop.f32.mrb[0].mxu0
        %v900 = vadd.f32 %v805, %v899
        %901 = vmatprep.mubr.f32.mxu0 0.0
        %v902 = vand.u32 %v294, 4294901760
        %903 = vmatmul.mubr.f32.gmra.mrb[0].mxu0 %v902
        %v904 = vpop.f32.mrb[0].mxu0
        %v905 = vadd.f32 %v810, %v904
        %v906 = vpop.f32.mrb[0].mxu0
        %v907 = vadd.f32 %v812, %v906
        %908 = vmatprep.mubr.f32.mxu0 0.0
        %v909 = vand.u32 %v297, 4294901760
        %910 = vmatmul.mubr.f32.gmra.mrb[0].mxu0 %v909
        %v911 = vpop.f32.mrb[0].mxu0
        %v912 = vadd.f32 %v817, %v911
        %v913 = vpop.f32.mrb[0].mxu0
        %v914 = vadd.f32 %v819, %v913
        %915 = vdwg.mxu0
        %v916 = vmin.f32 %v891, 0.0
        %v917 = vmin.f32 %v893, 0.0
        %v918 = vmin.f32 %v898, 0.0
        %v919 = vmin.f32 %v900, 0.0
        %v920 = vmin.f32 %v905, 0.0
        %v921 = vmin.f32 %v907, 0.0
        %v922 = vmin.f32 %v912, 0.0
        %v923 = vmin.f32 %v914, 0.0
        %v924 = vmul.f32 %v916, 1.442695
        %v925 = vpow.pop %v924
        %v926 = vmul.f32 %v917, 1.442695
        %v927 = vpow.pop %v926
        %v928 = vmul.f32 %v918, 1.442695
        %v929 = vpow.pop %v928
        %v930 = vmul.f32 %v919, 1.442695
        %v931 = vpow.pop %v930
        %v932 = vmul.f32 %v920, 1.442695
        %v933 = vpow.pop %v932
        %v934 = vmul.f32 %v921, 1.442695
        %v935 = vpow.pop %v934
        %v936 = vmul.f32 %v922, 1.442695
        %v937 = vpow.pop %v936
        %v938 = vmul.f32 %v923, 1.442695
        %v939 = vpow.pop %v938
        %v940 = vld [vmem:[%s3] sm:$0xf]
        %v941 = vld [vmem:[%s4] sm:$0xf]
        %943 = vset.pattern.permute.xlu0 0
        %944 = vperm.xlu0 %943, %v941
        %v945 = vpop.permute.xlu0 %944
        %vm947 = vcmask 261120
        %v949 = vsel %vm947, %v940, 0
        %v951 = vand.u32 %v927, 4294901760
        %952 = vmatprep.subr.mxu0 %v951
        %v953 = vand.u32 %v925, 4294901760
        %954 = vmatpush1.msra.mxu0 %v953
        %v955 = vand.u32 %v931, 4294901760
        %956 = vmatprep.subr.mxu0 %v955
        %v957 = vand.u32 %v929, 4294901760
        %958 = vmatpush1.msra.mxu0 %v957
        %v959 = vand.u32 %v935, 4294901760
        %960 = vmatprep.subr.mxu0 %v959
        %v961 = vand.u32 %v933, 4294901760
        %962 = vmatpush1.msra.mxu0 %v961
        %v963 = vand.u32 %v939, 4294901760
        %964 = vmatprep.subr.mxu0 %v963
        %v965 = vand.u32 %v937, 4294901760
        %966 = vmatpush1.msra.mxu0 %v965
        %967 = vmatprep.subr.mxu0 0.0
        %968 = vmatpush1.msra.mxu0 0.0
        %969 = vmatprep.subr.mxu0 0.0
        %970 = vmatpush1.msra.mxu0 0.0
        %971 = vmatprep.subr.mxu0 0.0
        %972 = vmatpush1.msra.mxu0 0.0
        %973 = vmatprep.subr.mxu0 0.0
        %974 = vmatpush1.msra.mxu0 0.0
        %975 = vmatprep.subr.mxu0 0.0
        %976 = vmatpush1.msra.mxu0 0.0
        %977 = vmatprep.subr.mxu0 0.0
        %978 = vmatpush1.msra.mxu0 0.0
        %979 = vmatprep.subr.mxu0 0.0
        %980 = vmatpush1.msra.mxu0 0.0
        %981 = vmatprep.subr.mxu0 0.0
        %982 = vmatpush1.msra.mxu0 0.0
        %983 = vmatprep.subr.mxu0 0.0
        %984 = vmatpush1.msra.mxu0 0.0
        %985 = vmatprep.subr.mxu0 0.0
        %986 = vmatpush1.msra.mxu0 0.0
        %987 = vmatprep.subr.mxu0 0.0
        %988 = vmatpush1.msra.mxu0 0.0
        %989 = vmatprep.subr.mxu0 0.0
        %990 = vmatpush1.msra.mxu0 0.0
        %991 = vmatprep.subr.mxu0 0.0
        %992 = vmatpush1.msra.mxu0 0.0
        %993 = vmatprep.subr.mxu0 0.0
        %994 = vmatpush1.msra.mxu0 0.0
        %995 = vmatprep.subr.mxu0 0.0
        %996 = vmatpush1.msra.mxu0 0.0
        %997 = vmatprep.subr.mxu0 0.0
        %998 = vmatpush1.msra.mxu0 0.0
        %999 = vmatprep.subr.mxu0 0.0
        %1000 = vmatpush1.msra.mxu0 0.0
        %1001 = vmatprep.subr.mxu0 0.0
        %1002 = vmatpush1.msra.mxu0 0.0
        %1003 = vmatprep.subr.mxu0 0.0
        %1004 = vmatpush1.msra.mxu0 0.0
        %1005 = vmatprep.subr.mxu0 0.0
        %1006 = vmatpush1.msra.mxu0 0.0
        %1007 = vmatprep.subr.mxu0 0.0
        %1008 = vmatpush1.msra.mxu0 0.0
        %1009 = vmatprep.subr.mxu0 0.0
        %1010 = vmatpush1.msra.mxu0 0.0
        %1011 = vmatprep.subr.mxu0 0.0
        %1012 = vmatpush1.msra.mxu0 0.0
        %1013 = vmatprep.subr.mxu0 0.0
        %1014 = vmatpush1.msra.mxu0 0.0
        %1015 = vmatprep.subr.mxu0 0.0
        %1016 = vmatpush1.msra.mxu0 0.0
        %1017 = vmatprep.subr.mxu0 0.0
        %1018 = vmatpush1.msra.mxu0 0.0
        %1019 = vmatprep.subr.mxu0 0.0
        %1020 = vmatpush1.msra.mxu0 0.0
        %1021 = vmatprep.subr.mxu0 0.0
        %1022 = vmatpush1.msra.mxu0 0.0
        %1023 = vmatprep.mubr.f32.mxu0 0.0
        %v1024 = vand.u32 %v949, 4294901760
        %v1025 = vsub.f32 %v949, %v1024
        %v1026 = vand.u32 %v1025, 4294901760
        %v1027 = vsub.f32 %v1025, %v1026
        %v1028 = vand.u32 %v1027, 4294901760
        %1029 = vmatmul.mubr.f32.gmra.mrb[0].mxu0 %v1028
        %v1030 = vpop.f32.mrb[0].mxu0
        %v1031 = vadd.f32 %v945, %v1030
        %v1032 = vpop.f32.mrb[0].mxu0
        %v1033 = vadd.f32 %v945, %v1032
        %1034 = vdwg.mxu0
        %v1035 = vand.u32 %v927, 4294901760
        %v1036 = vsub.f32 %v927, %v1035
        %v1037 = vand.u32 %v1036, 4294901760
        %v1038 = vsub.f32 %v1036, %v1037
        %v1039 = vand.u32 %v1038, 4294901760
        %1040 = vmatprep.subr.mxu0 %v1039
        %v1041 = vand.u32 %v925, 4294901760
        %v1042 = vsub.f32 %v925, %v1041
        %v1043 = vand.u32 %v1042, 4294901760
        %v1044 = vsub.f32 %v1042, %v1043
        %v1045 = vand.u32 %v1044, 4294901760
        %1046 = vmatpush1.msra.mxu0 %v1045
        %v1047 = vand.u32 %v931, 4294901760
        %v1048 = vsub.f32 %v931, %v1047
        %v1049 = vand.u32 %v1048, 4294901760
        %v1050 = vsub.f32 %v1048, %v1049
        %v1051 = vand.u32 %v1050, 4294901760
        %1052 = vmatprep.subr.mxu0 %v1051
        %v1053 = vand.u32 %v929, 4294901760
        %v1054 = vsub.f32 %v929, %v1053
        %v1055 = vand.u32 %v1054, 4294901760
        %v1056 = vsub.f32 %v1054, %v1055
        %v1057 = vand.u32 %v1056, 4294901760
        %1058 = vmatpush1.msra.mxu0 %v1057
        %v1059 = vand.u32 %v935, 4294901760
        %v1060 = vsub.f32 %v935, %v1059
        %v1061 = vand.u32 %v1060, 4294901760
        %v1062 = vsub.f32 %v1060, %v1061
        %v1063 = vand.u32 %v1062, 4294901760
        %1064 = vmatprep.subr.mxu0 %v1063
        %v1065 = vand.u32 %v933, 4294901760
        %v1066 = vsub.f32 %v933, %v1065
        %v1067 = vand.u32 %v1066, 4294901760
        %v1068 = vsub.f32 %v1066, %v1067
        %v1069 = vand.u32 %v1068, 4294901760
        %1070 = vmatpush1.msra.mxu0 %v1069
        %v1071 = vand.u32 %v939, 4294901760
        %v1072 = vsub.f32 %v939, %v1071
        %v1073 = vand.u32 %v1072, 4294901760
        %v1074 = vsub.f32 %v1072, %v1073
        %v1075 = vand.u32 %v1074, 4294901760
        %1076 = vmatprep.subr.mxu0 %v1075
        %v1077 = vand.u32 %v937, 4294901760
        %v1078 = vsub.f32 %v937, %v1077
        %v1079 = vand.u32 %v1078, 4294901760
        %v1080 = vsub.f32 %v1078, %v1079
        %v1081 = vand.u32 %v1080, 4294901760
        %1082 = vmatpush1.msra.mxu0 %v1081
        %1083 = vmatprep.subr.mxu0 0.0
        %1084 = vmatpush1.msra.mxu0 0.0
        %1085 = vmatprep.subr.mxu0 0.0
        %1086 = vmatpush1.msra.mxu0 0.0
        %1087 = vmatprep.subr.mxu0 0.0
        %1088 = vmatpush1.msra.mxu0 0.0
        %1089 = vmatprep.subr.mxu0 0.0
        %1090 = vmatpush1.msra.mxu0 0.0
        %1091 = vmatprep.subr.mxu0 0.0
        %1092 = vmatpush1.msra.mxu0 0.0
        %1093 = vmatprep.subr.mxu0 0.0
        %1094 = vmatpush1.msra.mxu0 0.0
        %1095 = vmatprep.subr.mxu0 0.0
        %1096 = vmatpush1.msra.mxu0 0.0
        %1097 = vmatprep.subr.mxu0 0.0
        %1098 = vmatpush1.msra.mxu0 0.0
        %1099 = vmatprep.subr.mxu0 0.0
        %1100 = vmatpush1.msra.mxu0 0.0
        %1101 = vmatprep.subr.mxu0 0.0
        %1102 = vmatpush1.msra.mxu0 0.0
        %1103 = vmatprep.subr.mxu0 0.0
        %1104 = vmatpush1.msra.mxu0 0.0
        %1105 = vmatprep.subr.mxu0 0.0
        %1106 = vmatpush1.msra.mxu0 0.0
        %1107 = vmatprep.subr.mxu0 0.0
        %1108 = vmatpush1.msra.mxu0 0.0
        %1109 = vmatprep.subr.mxu0 0.0
        %1110 = vmatpush1.msra.mxu0 0.0
        %1111 = vmatprep.subr.mxu0 0.0
        %1112 = vmatpush1.msra.mxu0 0.0
        %1113 = vmatprep.subr.mxu0 0.0
        %1114 = vmatpush1.msra.mxu0 0.0
        %1115 = vmatprep.subr.mxu0 0.0
        %1116 = vmatpush1.msra.mxu0 0.0
        %1117 = vmatprep.subr.mxu0 0.0
        %1118 = vmatpush1.msra.mxu0 0.0
        %1119 = vmatprep.subr.mxu0 0.0
        %1120 = vmatpush1.msra.mxu0 0.0
        %1121 = vmatprep.subr.mxu0 0.0
        %1122 = vmatpush1.msra.mxu0 0.0
        %1123 = vmatprep.subr.mxu0 0.0
        %1124 = vmatpush1.msra.mxu0 0.0
        %1125 = vmatprep.subr.mxu0 0.0
        %1126 = vmatpush1.msra.mxu0 0.0
        %1127 = vmatprep.subr.mxu0 0.0
        %1128 = vmatpush1.msra.mxu0 0.0
        %1129 = vmatprep.subr.mxu0 0.0
        %1130 = vmatpush1.msra.mxu0 0.0
        %1131 = vmatprep.subr.mxu0 0.0
        %1132 = vmatpush1.msra.mxu0 0.0
        %1133 = vmatprep.subr.mxu0 0.0
        %1134 = vmatpush1.msra.mxu0 0.0
        %1135 = vmatprep.subr.mxu0 0.0
        %1136 = vmatpush1.msra.mxu0 0.0
        %1137 = vmatprep.subr.mxu0 0.0
        %1138 = vmatpush1.msra.mxu0 0.0
        %1139 = vmatprep.mubr.f32.mxu0 0.0
        %v1140 = vand.u32 %v949, 4294901760
        %1141 = vmatmul.mubr.f32.gmra.mrb[0].mxu0 %v1140
        %v1142 = vpop.f32.mrb[0].mxu0
        %v1143 = vadd.f32 %v1031, %v1142
        %v1144 = vpop.f32.mrb[0].mxu0
        %v1145 = vadd.f32 %v1033, %v1144
        %1146 = vdwg.mxu0
        %v1147 = vand.u32 %v927, 4294901760
        %v1148 = vsub.f32 %v927, %v1147
        %1149 = vmatprep.subr.mxu0 %v1148
        %v1150 = vand.u32 %v925, 4294901760
        %v1151 = vsub.f32 %v925, %v1150
        %1152 = vmatpush1.msra.mxu0 %v1151
        %v1153 = vand.u32 %v931, 4294901760
        %v1154 = vsub.f32 %v931, %v1153
        %1155 = vmatprep.subr.mxu0 %v1154
        %v1156 = vand.u32 %v929, 4294901760
        %v1157 = vsub.f32 %v929, %v1156
        %1158 = vmatpush1.msra.mxu0 %v1157
        %v1159 = vand.u32 %v935, 4294901760
        %v1160 = vsub.f32 %v935, %v1159
        %1161 = vmatprep.subr.mxu0 %v1160
        %v1162 = vand.u32 %v933, 4294901760
        %v1163 = vsub.f32 %v933, %v1162
        %1164 = vmatpush1.msra.mxu0 %v1163
        %v1165 = vand.u32 %v939, 4294901760
        %v1166 = vsub.f32 %v939, %v1165
        %1167 = vmatprep.subr.mxu0 %v1166
        %v1168 = vand.u32 %v937, 4294901760
        %v1169 = vsub.f32 %v937, %v1168
        %1170 = vmatpush1.msra.mxu0 %v1169
        %1171 = vmatprep.subr.mxu0 0.0
        %1172 = vmatpush1.msra.mxu0 0.0
        %1173 = vmatprep.subr.mxu0 0.0
        %1174 = vmatpush1.msra.mxu0 0.0
        %1175 = vmatprep.subr.mxu0 0.0
        %1176 = vmatpush1.msra.mxu0 0.0
        %1177 = vmatprep.subr.mxu0 0.0
        %1178 = vmatpush1.msra.mxu0 0.0
        %1179 = vmatprep.subr.mxu0 0.0
        %1180 = vmatpush1.msra.mxu0 0.0
        %1181 = vmatprep.subr.mxu0 0.0
        %1182 = vmatpush1.msra.mxu0 0.0
        %1183 = vmatprep.subr.mxu0 0.0
        %1184 = vmatpush1.msra.mxu0 0.0
        %1185 = vmatprep.subr.mxu0 0.0
        %1186 = vmatpush1.msra.mxu0 0.0
        %1187 = vmatprep.subr.mxu0 0.0
        %1188 = vmatpush1.msra.mxu0 0.0
        %1189 = vmatprep.subr.mxu0 0.0
        %1190 = vmatpush1.msra.mxu0 0.0
        %1191 = vmatprep.subr.mxu0 0.0
        %1192 = vmatpush1.msra.mxu0 0.0
        %1193 = vmatprep.subr.mxu0 0.0
        %1194 = vmatpush1.msra.mxu0 0.0
        %1195 = vmatprep.subr.mxu0 0.0
        %1196 = vmatpush1.msra.mxu0 0.0
        %1197 = vmatprep.subr.mxu0 0.0
        %1198 = vmatpush1.msra.mxu0 0.0
        %1199 = vmatprep.subr.mxu0 0.0
        %1200 = vmatpush1.msra.mxu0 0.0
        %1201 = vmatprep.subr.mxu0 0.0
        %1202 = vmatpush1.msra.mxu0 0.0
        %1203 = vmatprep.subr.mxu0 0.0
        %1204 = vmatpush1.msra.mxu0 0.0
        %1205 = vmatprep.subr.mxu0 0.0
        %1206 = vmatpush1.msra.mxu0 0.0
        %1207 = vmatprep.subr.mxu0 0.0
        %1208 = vmatpush1.msra.mxu0 0.0
        %1209 = vmatprep.subr.mxu0 0.0
        %1210 = vmatpush1.msra.mxu0 0.0
        %1211 = vmatprep.subr.mxu0 0.0
        %1212 = vmatpush1.msra.mxu0 0.0
        %1213 = vmatprep.subr.mxu0 0.0
        %1214 = vmatpush1.msra.mxu0 0.0
        %1215 = vmatprep.subr.mxu0 0.0
        %1216 = vmatpush1.msra.mxu0 0.0
        %1217 = vmatprep.subr.mxu0 0.0
        %1218 = vmatpush1.msra.mxu0 0.0
        %1219 = vmatprep.subr.mxu0 0.0
        %1220 = vmatpush1.msra.mxu0 0.0
        %1221 = vmatprep.subr.mxu0 0.0
        %1222 = vmatpush1.msra.mxu0 0.0
        %1223 = vmatprep.subr.mxu0 0.0
        %1224 = vmatpush1.msra.mxu0 0.0
        %1225 = vmatprep.subr.mxu0 0.0
        %1226 = vmatpush1.msra.mxu0 0.0
        %1227 = vmatprep.mubr.f32.mxu0 0.0
        %v1228 = vand.u32 %v949, 4294901760
        %v1229 = vsub.f32 %v949, %v1228
        %1230 = vmatmul.mubr.f32.gmra.mrb[0].mxu0 %v1229
        %v1231 = vpop.f32.mrb[0].mxu0
        %v1232 = vadd.f32 %v1143, %v1231
        %v1233 = vpop.f32.mrb[0].mxu0
        %v1234 = vadd.f32 %v1145, %v1233
        %1235 = vdwg.mxu0
        %v1236 = vand.u32 %v927, 4294901760
        %1237 = vmatprep.subr.mxu0 %v1236
        %v1238 = vand.u32 %v925, 4294901760
        %1239 = vmatpush1.msra.mxu0 %v1238
        %v1240 = vand.u32 %v931, 4294901760
        %1241 = vmatprep.subr.mxu0 %v1240
        %v1242 = vand.u32 %v929, 4294901760
        %1243 = vmatpush1.msra.mxu0 %v1242
        %v1244 = vand.u32 %v935, 4294901760
        %1245 = vmatprep.subr.mxu0 %v1244
        %v1246 = vand.u32 %v933, 4294901760
        %1247 = vmatpush1.msra.mxu0 %v1246
        %v1248 = vand.u32 %v939, 4294901760
        %1249 = vmatprep.subr.mxu0 %v1248
        %v1250 = vand.u32 %v937, 4294901760
        %1251 = vmatpush1.msra.mxu0 %v1250
        %1252 = vmatprep.subr.mxu0 0.0
        %1253 = vmatpush1.msra.mxu0 0.0
        %1254 = vmatprep.subr.mxu0 0.0
        %1255 = vmatpush1.msra.mxu0 0.0
        %1256 = vmatprep.subr.mxu0 0.0
        %1257 = vmatpush1.msra.mxu0 0.0
        %1258 = vmatprep.subr.mxu0 0.0
        %1259 = vmatpush1.msra.mxu0 0.0
        %1260 = vmatprep.subr.mxu0 0.0
        %1261 = vmatpush1.msra.mxu0 0.0
        %1262 = vmatprep.subr.mxu0 0.0
        %1263 = vmatpush1.msra.mxu0 0.0
        %1264 = vmatprep.subr.mxu0 0.0
        %1265 = vmatpush1.msra.mxu0 0.0
        %1266 = vmatprep.subr.mxu0 0.0
        %1267 = vmatpush1.msra.mxu0 0.0
        %1268 = vmatprep.subr.mxu0 0.0
        %1269 = vmatpush1.msra.mxu0 0.0
        %1270 = vmatprep.subr.mxu0 0.0
        %1271 = vmatpush1.msra.mxu0 0.0
        %1272 = vmatprep.subr.mxu0 0.0
        %1273 = vmatpush1.msra.mxu0 0.0
        %1274 = vmatprep.subr.mxu0 0.0
        %1275 = vmatpush1.msra.mxu0 0.0
        %1276 = vmatprep.subr.mxu0 0.0
        %1277 = vmatpush1.msra.mxu0 0.0
        %1278 = vmatprep.subr.mxu0 0.0
        %1279 = vmatpush1.msra.mxu0 0.0
        %1280 = vmatprep.subr.mxu0 0.0
        %1281 = vmatpush1.msra.mxu0 0.0
        %1282 = vmatprep.subr.mxu0 0.0
        %1283 = vmatpush1.msra.mxu0 0.0
        %1284 = vmatprep.subr.mxu0 0.0
        %1285 = vmatpush1.msra.mxu0 0.0
        %1286 = vmatprep.subr.mxu0 0.0
        %1287 = vmatpush1.msra.mxu0 0.0
        %1288 = vmatprep.subr.mxu0 0.0
        %1289 = vmatpush1.msra.mxu0 0.0
        %1290 = vmatprep.subr.mxu0 0.0
        %1291 = vmatpush1.msra.mxu0 0.0
        %1292 = vmatprep.subr.mxu0 0.0
        %1293 = vmatpush1.msra.mxu0 0.0
        %1294 = vmatprep.subr.mxu0 0.0
        %1295 = vmatpush1.msra.mxu0 0.0
        %1296 = vmatprep.subr.mxu0 0.0
        %1297 = vmatpush1.msra.mxu0 0.0
        %1298 = vmatprep.subr.mxu0 0.0
        %1299 = vmatpush1.msra.mxu0 0.0
        %1300 = vmatprep.subr.mxu0 0.0
        %1301 = vmatpush1.msra.mxu0 0.0
        %1302 = vmatprep.subr.mxu0 0.0
        %1303 = vmatpush1.msra.mxu0 0.0
        %1304 = vmatprep.subr.mxu0 0.0
        %1305 = vmatpush1.msra.mxu0 0.0
        %1306 = vmatprep.subr.mxu0 0.0
        %1307 = vmatpush1.msra.mxu0 0.0
        %1308 = vmatprep.mubr.f32.mxu0 0.0
        %v1309 = vand.u32 %v949, 4294901760
        %v1310 = vsub.f32 %v949, %v1309
        %v1311 = vand.u32 %v1310, 4294901760
        %1312 = vmatmul.mubr.f32.gmra.mrb[0].mxu0 %v1311
        %v1313 = vpop.f32.mrb[0].mxu0
        %v1314 = vadd.f32 %v1232, %v1313
        %v1315 = vpop.f32.mrb[0].mxu0
        %v1316 = vadd.f32 %v1234, %v1315
        %1317 = vdwg.mxu0
        %v1318 = vand.u32 %v927, 4294901760
        %v1319 = vsub.f32 %v927, %v1318
        %v1320 = vand.u32 %v1319, 4294901760
        %1321 = vmatprep.subr.mxu0 %v1320
        %v1322 = vand.u32 %v925, 4294901760
        %v1323 = vsub.f32 %v925, %v1322
        %v1324 = vand.u32 %v1323, 4294901760
        %1325 = vmatpush1.msra.mxu0 %v1324
        %v1326 = vand.u32 %v931, 4294901760
        %v1327 = vsub.f32 %v931, %v1326
        %v1328 = vand.u32 %v1327, 4294901760
        %1329 = vmatprep.subr.mxu0 %v1328
        %v1330 = vand.u32 %v929, 4294901760
        %v1331 = vsub.f32 %v929, %v1330
        %v1332 = vand.u32 %v1331, 4294901760
        %1333 = vmatpush1.msra.mxu0 %v1332
        %v1334 = vand.u32 %v935, 4294901760
        %v1335 = vsub.f32 %v935, %v1334
        %v1336 = vand.u32 %v1335, 4294901760
        %1337 = vmatprep.subr.mxu0 %v1336
        %v1338 = vand.u32 %v933, 4294901760
        %v1339 = vsub.f32 %v933, %v1338
        %v1340 = vand.u32 %v1339, 4294901760
        %1341 = vmatpush1.msra.mxu0 %v1340
        %v1342 = vand.u32 %v939, 4294901760
        %v1343 = vsub.f32 %v939, %v1342
        %v1344 = vand.u32 %v1343, 4294901760
        %1345 = vmatprep.subr.mxu0 %v1344
        %v1346 = vand.u32 %v937, 4294901760
        %v1347 = vsub.f32 %v937, %v1346
        %v1348 = vand.u32 %v1347, 4294901760
        %1349 = vmatpush1.msra.mxu0 %v1348
        %1350 = vmatprep.subr.mxu0 0.0
        %1351 = vmatpush1.msra.mxu0 0.0
        %1352 = vmatprep.subr.mxu0 0.0
        %1353 = vmatpush1.msra.mxu0 0.0
        %1354 = vmatprep.subr.mxu0 0.0
        %1355 = vmatpush1.msra.mxu0 0.0
        %1356 = vmatprep.subr.mxu0 0.0
        %1357 = vmatpush1.msra.mxu0 0.0
        %1358 = vmatprep.subr.mxu0 0.0
        %1359 = vmatpush1.msra.mxu0 0.0
        %1360 = vmatprep.subr.mxu0 0.0
        %1361 = vmatpush1.msra.mxu0 0.0
        %1362 = vmatprep.subr.mxu0 0.0
        %1363 = vmatpush1.msra.mxu0 0.0
        %1364 = vmatprep.subr.mxu0 0.0
        %1365 = vmatpush1.msra.mxu0 0.0
        %1366 = vmatprep.subr.mxu0 0.0
        %1367 = vmatpush1.msra.mxu0 0.0
        %1368 = vmatprep.subr.mxu0 0.0
        %1369 = vmatpush1.msra.mxu0 0.0
        %1370 = vmatprep.subr.mxu0 0.0
        %1371 = vmatpush1.msra.mxu0 0.0
        %1372 = vmatprep.subr.mxu0 0.0
        %1373 = vmatpush1.msra.mxu0 0.0
        %1374 = vmatprep.subr.mxu0 0.0
        %1375 = vmatpush1.msra.mxu0 0.0
        %1376 = vmatprep.subr.mxu0 0.0
        %1377 = vmatpush1.msra.mxu0 0.0
        %1378 = vmatprep.subr.mxu0 0.0
        %1379 = vmatpush1.msra.mxu0 0.0
        %1380 = vmatprep.subr.mxu0 0.0
        %1381 = vmatpush1.msra.mxu0 0.0
        %1382 = vmatprep.subr.mxu0 0.0
        %1383 = vmatpush1.msra.mxu0 0.0
        %1384 = vmatprep.subr.mxu0 0.0
        %1385 = vmatpush1.msra.mxu0 0.0
        %1386 = vmatprep.subr.mxu0 0.0
        %1387 = vmatpush1.msra.mxu0 0.0
        %1388 = vmatprep.subr.mxu0 0.0
        %1389 = vmatpush1.msra.mxu0 0.0
        %1390 = vmatprep.subr.mxu0 0.0
        %1391 = vmatpush1.msra.mxu0 0.0
        %1392 = vmatprep.subr.mxu0 0.0
        %1393 = vmatpush1.msra.mxu0 0.0
        %1394 = vmatprep.subr.mxu0 0.0
        %1395 = vmatpush1.msra.mxu0 0.0
        %1396 = vmatprep.subr.mxu0 0.0
        %1397 = vmatpush1.msra.mxu0 0.0
        %1398 = vmatprep.subr.mxu0 0.0
        %1399 = vmatpush1.msra.mxu0 0.0
        %1400 = vmatprep.subr.mxu0 0.0
        %1401 = vmatpush1.msra.mxu0 0.0
        %1402 = vmatprep.subr.mxu0 0.0
        %1403 = vmatpush1.msra.mxu0 0.0
        %1404 = vmatprep.subr.mxu0 0.0
        %1405 = vmatpush1.msra.mxu0 0.0
        %1406 = vmatprep.mubr.f32.mxu0 0.0
        %v1407 = vand.u32 %v949, 4294901760
        %1408 = vmatmul.mubr.f32.gmra.mrb[0].mxu0 %v1407
        %v1409 = vpop.f32.mrb[0].mxu0
        %v1410 = vadd.f32 %v1314, %v1409
        %v1411 = vpop.f32.mrb[0].mxu0
        %v1412 = vadd.f32 %v1316, %v1411
        %1413 = vdwg.mxu0
        %v1414 = vand.u32 %v927, 4294901760
        %1415 = vmatprep.subr.mxu0 %v1414
        %v1416 = vand.u32 %v925, 4294901760
        %1417 = vmatpush1.msra.mxu0 %v1416
        %v1418 = vand.u32 %v931, 4294901760
        %1419 = vmatprep.subr.mxu0 %v1418
        %v1420 = vand.u32 %v929, 4294901760
        %1421 = vmatpush1.msra.mxu0 %v1420
        %v1422 = vand.u32 %v935, 4294901760
        %1423 = vmatprep.subr.mxu0 %v1422
        %v1424 = vand.u32 %v933, 4294901760
        %1425 = vmatpush1.msra.mxu0 %v1424
        %v1426 = vand.u32 %v939, 4294901760
        %1427 = vmatprep.subr.mxu0 %v1426
        %v1428 = vand.u32 %v937, 4294901760
        %1429 = vmatpush1.msra.mxu0 %v1428
        %1430 = vmatprep.subr.mxu0 0.0
        %1431 = vmatpush1.msra.mxu0 0.0
        %1432 = vmatprep.subr.mxu0 0.0
        %1433 = vmatpush1.msra.mxu0 0.0
        %1434 = vmatprep.subr.mxu0 0.0
        %1435 = vmatpush1.msra.mxu0 0.0
        %1436 = vmatprep.subr.mxu0 0.0
        %1437 = vmatpush1.msra.mxu0 0.0
        %1438 = vmatprep.subr.mxu0 0.0
        %1439 = vmatpush1.msra.mxu0 0.0
        %1440 = vmatprep.subr.mxu0 0.0
        %1441 = vmatpush1.msra.mxu0 0.0
        %1442 = vmatprep.subr.mxu0 0.0
        %1443 = vmatpush1.msra.mxu0 0.0
        %1444 = vmatprep.subr.mxu0 0.0
        %1445 = vmatpush1.msra.mxu0 0.0
        %1446 = vmatprep.subr.mxu0 0.0
        %1447 = vmatpush1.msra.mxu0 0.0
        %1448 = vmatprep.subr.mxu0 0.0
        %1449 = vmatpush1.msra.mxu0 0.0
        %1450 = vmatprep.subr.mxu0 0.0
        %1451 = vmatpush1.msra.mxu0 0.0
        %1452 = vmatprep.subr.mxu0 0.0
        %1453 = vmatpush1.msra.mxu0 0.0
        %1454 = vmatprep.subr.mxu0 0.0
        %1455 = vmatpush1.msra.mxu0 0.0
        %1456 = vmatprep.subr.mxu0 0.0
        %1457 = vmatpush1.msra.mxu0 0.0
        %1458 = vmatprep.subr.mxu0 0.0
        %1459 = vmatpush1.msra.mxu0 0.0
        %1460 = vmatprep.subr.mxu0 0.0
        %1461 = vmatpush1.msra.mxu0 0.0
        %1462 = vmatprep.subr.mxu0 0.0
        %1463 = vmatpush1.msra.mxu0 0.0
        %1464 = vmatprep.subr.mxu0 0.0
        %1465 = vmatpush1.msra.mxu0 0.0
        %1466 = vmatprep.subr.mxu0 0.0
        %1467 = vmatpush1.msra.mxu0 0.0
        %1468 = vmatprep.subr.mxu0 0.0
        %1469 = vmatpush1.msra.mxu0 0.0
        %1470 = vmatprep.subr.mxu0 0.0
        %1471 = vmatpush1.msra.mxu0 0.0
        %1472 = vmatprep.subr.mxu0 0.0
        %1473 = vmatpush1.msra.mxu0 0.0
        %1474 = vmatprep.subr.mxu0 0.0
        %1475 = vmatpush1.msra.mxu0 0.0
        %1476 = vmatprep.subr.mxu0 0.0
        %1477 = vmatpush1.msra.mxu0 0.0
        %1478 = vmatprep.subr.mxu0 0.0
        %1479 = vmatpush1.msra.mxu0 0.0
        %1480 = vmatprep.subr.mxu0 0.0
        %1481 = vmatpush1.msra.mxu0 0.0
        %1482 = vmatprep.subr.mxu0 0.0
        %1483 = vmatpush1.msra.mxu0 0.0
        %1484 = vmatprep.subr.mxu0 0.0
        %1485 = vmatpush1.msra.mxu0 0.0
        %1486 = vmatprep.mubr.f32.mxu0 0.0
        %v1487 = vand.u32 %v949, 4294901760
        %1488 = vmatmul.mubr.f32.gmra.mrb[0].mxu0 %v1487
        %v1489 = vpop.f32.mrb[0].mxu0
        %v1490 = vadd.f32 %v1410, %v1489
        %v1491 = vpop.f32.mrb[0].mxu0
        %v1492 = vadd.f32 %v1412, %v1491
        %1493 = vdwg.mxu0
        %v1496 = vcombine.low %v1490, %v1492
        %1498 = vst [vmem:[%s242] sm:$0xff] %v1496
        %s1499 = sand.u32 %s153, 1
        %s1500 = scalar_lea.sflag [#allocation3], %s1499
        %s1501 = sand.u32 %s153, 1
        %s1502 = smul.addr %s1501, 8
        %s1503 = scalar_lea.vmem [#allocation2], %s1502
        // Predicated region
        $region41: #{tpu_custom_call.1} parent=39 // pred_check
          %p1504 = pneg %p163
        $region42: #{tpu_custom_call.1} parent=39 // pred_check_branch
          %1506 = sbr.rel (%p1504) target = $region44
        $region43: #{tpu_custom_call.1} parent=39 // pred_region
          %s1507 = smul.u32 2, %s24
          %s1509 = ssub.s32 128, 128
          %1510 = vsyncadd %s1500, %s1509
          %s1511 = smul.addr %s23, 4
          %s1512 = sadd.s32 %s1507, %s1511
          %s1513 = smul.addr %s1512, 64
          %s1514 = scalar_lea.hbm %s5, %s1513
          %s1516 = sshll.u32 %s1503, 4
          %s1517 = int_to_ptr.vmem [resolvable:$true] %s1516
          %1519 = dma.vmem_to_hbm [thread:$0]  %s1517, 128, %s1514, %s1500
        $region44: #{tpu_custom_call.1} parent=39 // pred_fallthru
          _
      $region40: #{tpu_custom_call.1} parent=5 // pred_fallthru
        _
      %p1520 = scmp.le.s32.totalorder 2, %s14
      // Predicated region
      $region45: #{tpu_custom_call.1} parent=5 // pred_check
        %p1521 = pneg %p1520
      $region46: #{tpu_custom_call.1} parent=5 // pred_check_branch
        %1523 = sbr.rel (%p1521) target = $region48
      $region47: #{tpu_custom_call.1} parent=5 // pred_region
        %s1524 = ssub.s32 %s14, 2
        // Predicated region
        $region49: #{tpu_custom_call.1} parent=47 // pred_check
          %p1525 = pneg %p169
        $region50: #{tpu_custom_call.1} parent=47 // pred_check_branch
          %1527 = sbr.rel (%p1525) target = $region52
        $region51: #{tpu_custom_call.1} parent=47 // pred_region
          %s1528 = sand.u32 %s154, 1
          %s1529 = scalar_lea.sflag [#allocation3], %s1528
          %s1530 = sand.u32 %s154, 1
          %s1531 = smul.addr %s1530, 8
          %s1532 = scalar_lea.vmem [#allocation2], %s1531
          %1533 = dma.done %s1529, 128
        $region52: #{tpu_custom_call.1} parent=47 // pred_fallthru
          _
      $region48: #{tpu_custom_call.1} parent=5 // pred_fallthru
        _
    $region6: #{tpu_custom_call.1} parent=1 // loop_footer
      %s18 = sadd.s32 1, %s14
    $region7: #{tpu_custom_call.1} parent=1 // loop_footer_branch
      %13 = sbr.rel target = $region3
    $region8: #{tpu_custom_call.1} parent=1 // loop_exit
      _
    %1534 = vsyncpa [#allocation3], 1
    %s1535 = scalar_lea.sflag [#allocation3], 1
    %1536 = vsyncpa %s1535, 1

</llo_original>
